<compile_context>
chip_gen: v5e
topology: v5e:2x2
jax: 0.10.0
libtpu: 0.0.40
codegen_flags: <defaults>
</compile_context>

<pallas_src>
import jax
import jax.numpy as jnp
from jax import lax
from jax.experimental import pallas as pl
from jax.experimental.pallas import tpu as pltpu


def _leaky(v):
    return jnp.where(v > 0, v, 0.1 * v)


def _make_block_kernel(N, C, H, W, k, dilation, res_num, pad_off):
    """Fused ResnetBlock kernel; activations laid out (N*C, H*W) in one step."""
    NC = N * C
    HW = H * W
    half = k // 2

    def kernel(x_ref, w_ref, b_ref, out_ref, pad_ref, col_ref):
        # Zero the padded flat-spatial scratch once; the halo must read as 0.
        # Every conv only overwrites the (lane-aligned) centre, so the halo
        # stays zero for the whole kernel.
        pad_ref[...] = jnp.zeros_like(pad_ref)

        # Column index (w) of every flattened spatial position — used to mask
        # taps whose horizontal shift crosses a row boundary in the flat layout.
        w_idx = lax.broadcasted_iota(jnp.int32, (NC, HW), 1) % W
        needed_dw = sorted({s * d for d in set(dilation)
                            for s in range(-half, half + 1) if s != 0})
        masks = {dw: jnp.logical_and(w_idx + dw >= 0, w_idx + dw < W)
                 for dw in needed_dw}

        def conv(x_val, j, dil):
            # Lane-aligned centre write (pad_off is a multiple of 128).
            pad_ref[:, pad_off:pad_off + HW] = x_val
            # Stage the k*k taps into the im2col scratch at 8-aligned sublane
            # offsets; zero halo + horizontal-wrap masks give 'same' padding.
            for kh in range(k):
                dh = (kh - half) * dil
                for kw in range(k):
                    dw = (kw - half) * dil
                    t = kh * k + kw
                    off = pad_off + dh * W + dw          # static lane offset
                    p = pad_ref[:, off:off + HW]         # (NC, HW) shifted tap
                    if dw != 0:
                        p = jnp.where(masks[dw], p, 0.0)
                    col_ref[t * NC:(t + 1) * NC, :] = p
            out = jnp.dot(w_ref[j], col_ref[...],        # (NC, HW)
                          preferred_element_type=jnp.float32)
            return out + b_ref[j]                        # bias (NC, 1)

        x0 = x_ref[...].astype(jnp.float32)              # (NC, HW)
        x = x0
        for i in range(res_num):
            h = _leaky(conv(x, 2 * i, dilation[0]))
            xx = conv(h, 2 * i + 1, dilation[1])
            x = _leaky(x + xx)
        if res_num > 1:
            x = x + x0
        out_ref[...] = x.astype(out_ref.dtype)           # lane-dense direct store

    return kernel


def resnet_block_forward(x_nchw, params, dilation, res_num):
    """Pallas implementation of ResnetBlock.forward. Input/output are NCHW."""
    N, C, H, W = x_nchw.shape
    k = params[0][0].shape[0]
    half = k // 2
    NC = N * C
    HW = H * W
    KK = k * k
    n_conv = 2 * res_num

    # Max |dh*W + dw| over all taps, rounded up to a lane tile so the centre
    # write is 128-aligned.  Static safety check: every tap slice stays inside
    # the scratch buffer [0, HW + 2*pad_off).
    max_off = max(dilation) * half * (W + 1)
    pad_off = ((max_off + 127) // 128) * 128
    assert pad_off >= max_off, "tap offsets would fall outside the pad scratch"

    # Pack each conv as a block-diagonal (NC, KK*NC) matmul matrix whose column
    # order matches the in-kernel tap stacking: col = tap*NC + img*C + ci;
    # row = img*C + co.  Params are HWIO (kh, kw, ci, co).
    eye_n = jnp.eye(N, dtype=jnp.float32)
    w_list, b_list = [], []
    for (w1, b1, w2, b2) in params:
        for w, b in ((w1, b1), (w2, b2)):
            m = jnp.transpose(w, (0, 1, 3, 2)).reshape(KK, C, C)   # (tap, co, ci)
            blk = jnp.einsum('ab,tij->taibj', eye_n,
                             m.astype(jnp.float32)).reshape(KK, NC, NC)
            wb = jnp.transpose(blk, (1, 0, 2)).reshape(NC, KK * NC)
            w_list.append(wb)
            b_list.append(jnp.tile(b.astype(jnp.float32), N).reshape(NC, 1))
    w_all = jnp.stack(w_list)                     # (n_conv, NC, KK*NC)
    b_all = jnp.stack(b_list)                     # (n_conv, NC, 1)

    x_flat = x_nchw.reshape(NC, HW)               # free reshape (row-major)

    kernel = _make_block_kernel(N, C, H, W, k, tuple(dilation), res_num, pad_off)

    out = pl.pallas_call(
        kernel,
        out_shape=jax.ShapeDtypeStruct((NC, HW), x_nchw.dtype),
        grid=(1,),
        in_specs=[
            pl.BlockSpec((NC, HW), lambda i: (0, 0)),
            pl.BlockSpec((n_conv, NC, KK * NC), lambda i: (0, 0, 0)),
            pl.BlockSpec((n_conv, NC, 1), lambda i: (0, 0, 0)),
        ],
        out_specs=pl.BlockSpec((NC, HW), lambda i: (0, 0)),
        scratch_shapes=[
            pltpu.VMEM((NC, HW + 2 * pad_off), jnp.float32),   # padded spatial
            pltpu.VMEM((KK * NC, HW), jnp.float32),            # im2col stack
        ],
        compiler_params=pltpu.CompilerParams(
            dimension_semantics=("arbitrary",)),
    )(x_flat, w_all, b_all)

    return out.reshape(N, C, H, W)                # free reshape (N,C major order)


# ----------------------------- reference (pure JAX) -------------------------


def _conv_ref(x_nhwc, w_hwio, b, dilation):
    k = w_hwio.shape[0]
    pad = (k - 1) // 2 * dilation
    out = lax.conv_general_dilated(
        x_nhwc,
        w_hwio,
        window_strides=(1, 1),
        padding=[(pad, pad), (pad, pad)],
        rhs_dilation=(dilation, dilation),
        dimension_numbers=("NHWC", "HWIO", "NHWC"),
    )
    return out + b[None, None, None, :]


def resnet_block_ref(x_nchw, params, dilation, res_num):
    x = jnp.transpose(x_nchw, (0, 2, 3, 1))
    if res_num > 1:
        temp = x
    for i in range(res_num):
        w1, b1, w2, b2 = params[i]
        h = _leaky(_conv_ref(x, w1, b1, dilation[0]))
        xx = _conv_ref(h, w2, b2, dilation[1])
        x = _leaky(x + xx)
    if res_num > 1:
        x = x + temp
    return jnp.transpose(x, (0, 3, 1, 2))


# ----------------------------------- main ------------------------------------

if __name__ == "__main__":
    # Module config: ResnetBlock(in_channels=4, kernel_size=3, dilation=(1, 2),
    #                            bias=True, res_num=2)
    in_channels = 4
    kernel_size = 3
    dilation = (1, 2)
    res_num = 2

    N, C, H, W = 2, in_channels, 16, 16

    key = jax.random.PRNGKey(0)
    kx, *kp = jax.random.split(key, 1 + 4 * res_num)
    x = jax.random.normal(kx, (N, C, H, W), jnp.float32)

    # Deterministic parameter init. Weights stored in HWIO (kh, kw, ci, co)
    # layout (equivalent to PyTorch's (co, ci, kh, kw) transposed); biases (C,).
    scale = 1.0 / (C * kernel_size * kernel_size) ** 0.5
    params = []
    for i in range(res_num):
        k1, k2, k3, k4 = kp[4 * i: 4 * i + 4]
        w1 = scale * jax.random.normal(
            k1, (kernel_size, kernel_size, C, C), jnp.float32)
        b1 = scale * jax.random.normal(k2, (C,), jnp.float32)
        w2 = scale * jax.random.normal(
            k3, (kernel_size, kernel_size, C, C), jnp.float32)
        b2 = scale * jax.random.normal(k4, (C,), jnp.float32)
        params.append((w1, b1, w2, b2))

    out = resnet_block_forward(x, params, dilation, res_num)
    out = jax.block_until_ready(out)

    ref = resnet_block_ref(x, params, dilation, res_num)
    assert out.shape == (N, C, H, W)
    assert jnp.allclose(out, ref, atol=1e-4, rtol=1e-4), "mismatch vs reference"

    print("KERNEL_OK")
</pallas_src>

<mosaic_0001>
module attributes {stable_mosaic.version = 11 : i64} {
  func.func @kernel(%arg0: i32, %arg1: memref<8x256xf32, #tpu.memory_space<vmem>>, %arg2: memref<4x8x72xf32, #tpu.memory_space<vmem>>, %arg3: memref<4x8x1xf32, #tpu.memory_space<vmem>>, %arg4: memref<8x256xf32, #tpu.memory_space<vmem>>, %arg5: memref<8x512xf32, #tpu.memory_space<vmem>>, %arg6: memref<72x256xf32, #tpu.memory_space<vmem>>) attributes {dimension_semantics = [#tpu.dimension_semantics<arbitrary>], iteration_bounds = array<i64: 1>, scalar_prefetch = 0 : i64, scratch_operands = 2 : i64, tpu.core_type = #tpu.core_type<tc>, window_params = [{pipeline_mode = #tpu.pipeline_mode<synchronous>, transform_indices = @transform_0, window_bounds = array<i64: 8, 256>}, {pipeline_mode = #tpu.pipeline_mode<synchronous>, transform_indices = @transform_1, window_bounds = array<i64: 4, 8, 72>}, {pipeline_mode = #tpu.pipeline_mode<synchronous>, transform_indices = @transform_2, window_bounds = array<i64: 4, 8, 1>}, {pipeline_mode = #tpu.pipeline_mode<synchronous>, transform_indices = @transform_3, window_bounds = array<i64: 8, 256>}]} {
    %cst = arith.constant 0.000000e+00 : f32
    %0 = vector.broadcast %cst : f32 to vector<8x512xf32>
    %c0 = arith.constant 0 : index
    %c0_0 = arith.constant 0 : index
    %1 = vector.load %arg5[%c0, %c0_0] : memref<8x512xf32, #tpu.memory_space<vmem>>, vector<8x512xf32>
    tpu.vector_store %arg5[%c0, %c0_0], %0 {strides = array<i32>} : memref<8x512xf32, #tpu.memory_space<vmem>>, vector<8x512xf32>,
    %2 = tpu.iota {dimensions = array<i32: 1>} : vector<8x256xi32>
    %c16_i32 = arith.constant 16 : i32
    %c0_i32 = arith.constant 0 : i32
    %3 = arith.cmpi eq, %c16_i32, %c0_i32 : i32
    %c1_i32 = arith.constant 1 : i32
    %4 = arith.select %3, %c1_i32, %c16_i32 : i32
    %5 = vector.broadcast %4 : i32 to vector<8x256xi32>
    %6 = arith.remsi %2, %5 : vector<8x256xi32>
    %c0_i32_1 = arith.constant 0 : i32
    %7 = vector.broadcast %c0_i32_1 : i32 to vector<8x256xi32>
    %8 = arith.cmpi ne, %6, %7 : vector<8x256xi32>
    %c0_i32_2 = arith.constant 0 : i32
    %9 = vector.broadcast %c0_i32_2 : i32 to vector<8x256xi32>
    %10 = arith.cmpi slt, %6, %9 : vector<8x256xi32>
    %c0_i32_3 = arith.constant 0 : i32
    %11 = arith.cmpi slt, %4, %c0_i32_3 : i32
    %12 = vector.broadcast %11 : i1 to vector<8x256xi1>
    %13 = vector.broadcast %12 : vector<8x256xi1> to vector<8x256xi1>
    %14 = arith.xori %10, %13 : vector<8x256xi1>
    %15 = arith.andi %14, %8 : vector<8x256xi1>
    %16 = vector.broadcast %4 : i32 to vector<8x256xi32>
    %17 = arith.addi %6, %16 : vector<8x256xi32>
    %18 = arith.select %15, %17, %6 : vector<8x256xi1>, vector<8x256xi32>
    %c-2_i32 = arith.constant -2 : i32
    %19 = vector.broadcast %c-2_i32 : i32 to vector<8x256xi32>
    %20 = arith.addi %18, %19 : vector<8x256xi32>
    %c0_i32_4 = arith.constant 0 : i32
    %21 = vector.broadcast %c0_i32_4 : i32 to vector<8x256xi32>
    %22 = arith.cmpi sge, %20, %21 : vector<8x256xi32>
    %c-2_i32_5 = arith.constant -2 : i32
    %23 = vector.broadcast %c-2_i32_5 : i32 to vector<8x256xi32>
    %24 = arith.addi %18, %23 : vector<8x256xi32>
    %c16_i32_6 = arith.constant 16 : i32
    %25 = vector.broadcast %c16_i32_6 : i32 to vector<8x256xi32>
    %26 = arith.cmpi slt, %24, %25 : vector<8x256xi32>
    %27 = arith.andi %22, %26 : vector<8x256xi1>
    %c-1_i32 = arith.constant -1 : i32
    %28 = vector.broadcast %c-1_i32 : i32 to vector<8x256xi32>
    %29 = arith.addi %18, %28 : vector<8x256xi32>
    %c0_i32_7 = arith.constant 0 : i32
    %30 = vector.broadcast %c0_i32_7 : i32 to vector<8x256xi32>
    %31 = arith.cmpi sge, %29, %30 : vector<8x256xi32>
    %c-1_i32_8 = arith.constant -1 : i32
    %32 = vector.broadcast %c-1_i32_8 : i32 to vector<8x256xi32>
    %33 = arith.addi %18, %32 : vector<8x256xi32>
    %c16_i32_9 = arith.constant 16 : i32
    %34 = vector.broadcast %c16_i32_9 : i32 to vector<8x256xi32>
    %35 = arith.cmpi slt, %33, %34 : vector<8x256xi32>
    %36 = arith.andi %31, %35 : vector<8x256xi1>
    %c1_i32_10 = arith.constant 1 : i32
    %37 = vector.broadcast %c1_i32_10 : i32 to vector<8x256xi32>
    %38 = arith.addi %18, %37 : vector<8x256xi32>
    %c0_i32_11 = arith.constant 0 : i32
    %39 = vector.broadcast %c0_i32_11 : i32 to vector<8x256xi32>
    %40 = arith.cmpi sge, %38, %39 : vector<8x256xi32>
    %c1_i32_12 = arith.constant 1 : i32
    %41 = vector.broadcast %c1_i32_12 : i32 to vector<8x256xi32>
    %42 = arith.addi %18, %41 : vector<8x256xi32>
    %c16_i32_13 = arith.constant 16 : i32
    %43 = vector.broadcast %c16_i32_13 : i32 to vector<8x256xi32>
    %44 = arith.cmpi slt, %42, %43 : vector<8x256xi32>
    %45 = arith.andi %40, %44 : vector<8x256xi1>
    %c2_i32 = arith.constant 2 : i32
    %46 = vector.broadcast %c2_i32 : i32 to vector<8x256xi32>
    %47 = arith.addi %18, %46 : vector<8x256xi32>
    %c0_i32_14 = arith.constant 0 : i32
    %48 = vector.broadcast %c0_i32_14 : i32 to vector<8x256xi32>
    %49 = arith.cmpi sge, %47, %48 : vector<8x256xi32>
    %c2_i32_15 = arith.constant 2 : i32
    %50 = vector.broadcast %c2_i32_15 : i32 to vector<8x256xi32>
    %51 = arith.addi %18, %50 : vector<8x256xi32>
    %c16_i32_16 = arith.constant 16 : i32
    %52 = vector.broadcast %c16_i32_16 : i32 to vector<8x256xi32>
    %53 = arith.cmpi slt, %51, %52 : vector<8x256xi32>
    %54 = arith.andi %49, %53 : vector<8x256xi1>
    %c0_17 = arith.constant 0 : index
    %c0_18 = arith.constant 0 : index
    %55 = vector.load %arg1[%c0_17, %c0_18] : memref<8x256xf32, #tpu.memory_space<vmem>>, vector<8x256xf32>
    %c0_19 = arith.constant 0 : index
    %c128 = arith.constant 128 : index
    %56 = vector.load %arg5[%c0_19, %c128] : memref<8x512xf32, #tpu.memory_space<vmem>>, vector<8x256xf32>
    tpu.vector_store %arg5[%c0_19, %c128], %55 {strides = array<i32>} : memref<8x512xf32, #tpu.memory_space<vmem>>, vector<8x256xf32>,
    %c0_20 = arith.constant 0 : index
    %c111 = arith.constant 111 : index
    %57 = vector.load %arg5[%c0_20, %c111] : memref<8x512xf32, #tpu.memory_space<vmem>>, vector<8x256xf32>
    %cst_21 = arith.constant 0.000000e+00 : f32
    %58 = vector.broadcast %cst_21 : f32 to vector<8x256xf32>
    %59 = arith.select %36, %57, %58 : vector<8x256xi1>, vector<8x256xf32>
    %c0_22 = arith.constant 0 : index
    %c0_23 = arith.constant 0 : index
    %60 = vector.load %arg6[%c0_22, %c0_23] : memref<72x256xf32, #tpu.memory_space<vmem>>, vector<8x256xf32>
    tpu.vector_store %arg6[%c0_22, %c0_23], %59 {strides = array<i32>} : memref<72x256xf32, #tpu.memory_space<vmem>>, vector<8x256xf32>,
    %c0_24 = arith.constant 0 : index
    %c112 = arith.constant 112 : index
    %61 = vector.load %arg5[%c0_24, %c112] : memref<8x512xf32, #tpu.memory_space<vmem>>, vector<8x256xf32>
    %c8 = arith.constant 8 : index
    %c0_25 = arith.constant 0 : index
    %62 = vector.load %arg6[%c8, %c0_25] : memref<72x256xf32, #tpu.memory_space<vmem>>, vector<8x256xf32>
    tpu.vector_store %arg6[%c8, %c0_25], %61 {strides = array<i32>} : memref<72x256xf32, #tpu.memory_space<vmem>>, vector<8x256xf32>,
    %c0_26 = arith.constant 0 : index
    %c113 = arith.constant 113 : index
    %63 = vector.load %arg5[%c0_26, %c113] : memref<8x512xf32, #tpu.memory_space<vmem>>, vector<8x256xf32>
    %cst_27 = arith.constant 0.000000e+00 : f32
    %64 = vector.broadcast %cst_27 : f32 to vector<8x256xf32>
    %65 = arith.select %45, %63, %64 : vector<8x256xi1>, vector<8x256xf32>
    %c16 = arith.constant 16 : index
    %c0_28 = arith.constant 0 : index
    %66 = vector.load %arg6[%c16, %c0_28] : memref<72x256xf32, #tpu.memory_space<vmem>>, vector<8x256xf32>
    tpu.vector_store %arg6[%c16, %c0_28], %65 {strides = array<i32>} : memref<72x256xf32, #tpu.memory_space<vmem>>, vector<8x256xf32>,
    %c0_29 = arith.constant 0 : index
    %c127 = arith.constant 127 : index
    %67 = vector.load %arg5[%c0_29, %c127] : memref<8x512xf32, #tpu.memory_space<vmem>>, vector<8x256xf32>
    %cst_30 = arith.constant 0.000000e+00 : f32
    %68 = vector.broadcast %cst_30 : f32 to vector<8x256xf32>
    %69 = arith.select %36, %67, %68 : vector<8x256xi1>, vector<8x256xf32>
    %c24 = arith.constant 24 : index
    %c0_31 = arith.constant 0 : index
    %70 = vector.load %arg6[%c24, %c0_31] : memref<72x256xf32, #tpu.memory_space<vmem>>, vector<8x256xf32>
    tpu.vector_store %arg6[%c24, %c0_31], %69 {strides = array<i32>} : memref<72x256xf32, #tpu.memory_space<vmem>>, vector<8x256xf32>,
    %c0_32 = arith.constant 0 : index
    %c128_33 = arith.constant 128 : index
    %71 = vector.load %arg5[%c0_32, %c128_33] : memref<8x512xf32, #tpu.memory_space<vmem>>, vector<8x256xf32>
    %c32 = arith.constant 32 : index
    %c0_34 = arith.constant 0 : index
    %72 = vector.load %arg6[%c32, %c0_34] : memref<72x256xf32, #tpu.memory_space<vmem>>, vector<8x256xf32>
    tpu.vector_store %arg6[%c32, %c0_34], %71 {strides = array<i32>} : memref<72x256xf32, #tpu.memory_space<vmem>>, vector<8x256xf32>,
    %c0_35 = arith.constant 0 : index
    %c129 = arith.constant 129 : index
    %73 = vector.load %arg5[%c0_35, %c129] : memref<8x512xf32, #tpu.memory_space<vmem>>, vector<8x256xf32>
    %cst_36 = arith.constant 0.000000e+00 : f32
    %74 = vector.broadcast %cst_36 : f32 to vector<8x256xf32>
    %75 = arith.select %45, %73, %74 : vector<8x256xi1>, vector<8x256xf32>
    %c40 = arith.constant 40 : index
    %c0_37 = arith.constant 0 : index
    %76 = vector.load %arg6[%c40, %c0_37] : memref<72x256xf32, #tpu.memory_space<vmem>>, vector<8x256xf32>
    tpu.vector_store %arg6[%c40, %c0_37], %75 {strides = array<i32>} : memref<72x256xf32, #tpu.memory_space<vmem>>, vector<8x256xf32>,
    %c0_38 = arith.constant 0 : index
    %c143 = arith.constant 143 : index
    %77 = vector.load %arg5[%c0_38, %c143] : memref<8x512xf32, #tpu.memory_space<vmem>>, vector<8x256xf32>
    %cst_39 = arith.constant 0.000000e+00 : f32
    %78 = vector.broadcast %cst_39 : f32 to vector<8x256xf32>
    %79 = arith.select %36, %77, %78 : vector<8x256xi1>, vector<8x256xf32>
    %c48 = arith.constant 48 : index
    %c0_40 = arith.constant 0 : index
    %80 = vector.load %arg6[%c48, %c0_40] : memref<72x256xf32, #tpu.memory_space<vmem>>, vector<8x256xf32>
    tpu.vector_store %arg6[%c48, %c0_40], %79 {strides = array<i32>} : memref<72x256xf32, #tpu.memory_space<vmem>>, vector<8x256xf32>,
    %c0_41 = arith.constant 0 : index
    %c144 = arith.constant 144 : index
    %81 = vector.load %arg5[%c0_41, %c144] : memref<8x512xf32, #tpu.memory_space<vmem>>, vector<8x256xf32>
    %c56 = arith.constant 56 : index
    %c0_42 = arith.constant 0 : index
    %82 = vector.load %arg6[%c56, %c0_42] : memref<72x256xf32, #tpu.memory_space<vmem>>, vector<8x256xf32>
    tpu.vector_store %arg6[%c56, %c0_42], %81 {strides = array<i32>} : memref<72x256xf32, #tpu.memory_space<vmem>>, vector<8x256xf32>,
    %c0_43 = arith.constant 0 : index
    %c145 = arith.constant 145 : index
    %83 = vector.load %arg5[%c0_43, %c145] : memref<8x512xf32, #tpu.memory_space<vmem>>, vector<8x256xf32>
    %cst_44 = arith.constant 0.000000e+00 : f32
    %84 = vector.broadcast %cst_44 : f32 to vector<8x256xf32>
    %85 = arith.select %45, %83, %84 : vector<8x256xi1>, vector<8x256xf32>
    %c64 = arith.constant 64 : index
    %c0_45 = arith.constant 0 : index
    %86 = vector.load %arg6[%c64, %c0_45] : memref<72x256xf32, #tpu.memory_space<vmem>>, vector<8x256xf32>
    tpu.vector_store %arg6[%c64, %c0_45], %85 {strides = array<i32>} : memref<72x256xf32, #tpu.memory_space<vmem>>, vector<8x256xf32>,
    %c0_46 = arith.constant 0 : index
    %c0_47 = arith.constant 0 : index
    %c0_48 = arith.constant 0 : index
    %87 = vector.load %arg2[%c0_46, %c0_47, %c0_48] : memref<4x8x72xf32, #tpu.memory_space<vmem>>, vector<1x8x72xf32>
    %88 = vector.shape_cast %87 : vector<1x8x72xf32> to vector<8x72xf32>
    %c0_49 = arith.constant 0 : index
    %c0_50 = arith.constant 0 : index
    %89 = vector.load %arg6[%c0_49, %c0_50] : memref<72x256xf32, #tpu.memory_space<vmem>>, vector<72x256xf32>
    %cst_51 = arith.constant dense<0.000000e+00> : vector<8x256xf32>
    %90 = tpu.matmul %88, %89, %cst_51 {dimension_numbers = #tpu.dot_dimension_numbers<[1], [0], [0], [1], [0, 0, 1, 1], [], []>} : vector<8x72xf32>, vector<72x256xf32>, vector<8x256xf32> -> vector<8x256xf32>
    %c0_52 = arith.constant 0 : index
    %c0_53 = arith.constant 0 : index
    %c0_54 = arith.constant 0 : index
    %91 = vector.load %arg3[%c0_52, %c0_53, %c0_54] : memref<4x8x1xf32, #tpu.memory_space<vmem>>, vector<1x8x1xf32>
    %92 = vector.shape_cast %91 : vector<1x8x1xf32> to vector<8x1xf32>
    %93 = vector.broadcast %92 : vector<8x1xf32> to vector<8x256xf32>
    %94 = arith.addf %90, %93 : vector<8x256xf32>
    %cst_55 = arith.constant 0.000000e+00 : f32
    %95 = vector.broadcast %cst_55 : f32 to vector<8x256xf32>
    %96 = arith.cmpf ogt, %94, %95 : vector<8x256xf32>
    %cst_56 = arith.constant 1.000000e-01 : f32
    %97 = vector.broadcast %cst_56 : f32 to vector<8x256xf32>
    %98 = arith.mulf %97, %94 : vector<8x256xf32>
    %99 = arith.select %96, %94, %98 : vector<8x256xi1>, vector<8x256xf32>
    %c0_57 = arith.constant 0 : index
    %c128_58 = arith.constant 128 : index
    %100 = vector.load %arg5[%c0_57, %c128_58] : memref<8x512xf32, #tpu.memory_space<vmem>>, vector<8x256xf32>
    tpu.vector_store %arg5[%c0_57, %c128_58], %99 {strides = array<i32>} : memref<8x512xf32, #tpu.memory_space<vmem>>, vector<8x256xf32>,
    %c0_59 = arith.constant 0 : index
    %c94 = arith.constant 94 : index
    %101 = vector.load %arg5[%c0_59, %c94] : memref<8x512xf32, #tpu.memory_space<vmem>>, vector<8x256xf32>
    %cst_60 = arith.constant 0.000000e+00 : f32
    %102 = vector.broadcast %cst_60 : f32 to vector<8x256xf32>
    %103 = arith.select %27, %101, %102 : vector<8x256xi1>, vector<8x256xf32>
    %c0_61 = arith.constant 0 : index
    %c0_62 = arith.constant 0 : index
    %104 = vector.load %arg6[%c0_61, %c0_62] : memref<72x256xf32, #tpu.memory_space<vmem>>, vector<8x256xf32>
    tpu.vector_store %arg6[%c0_61, %c0_62], %103 {strides = array<i32>} : memref<72x256xf32, #tpu.memory_space<vmem>>, vector<8x256xf32>,
    %c0_63 = arith.constant 0 : index
    %c96 = arith.constant 96 : index
    %105 = vector.load %arg5[%c0_63, %c96] : memref<8x512xf32, #tpu.memory_space<vmem>>, vector<8x256xf32>
    %c8_64 = arith.constant 8 : index
    %c0_65 = arith.constant 0 : index
    %106 = vector.load %arg6[%c8_64, %c0_65] : memref<72x256xf32, #tpu.memory_space<vmem>>, vector<8x256xf32>
    tpu.vector_store %arg6[%c8_64, %c0_65], %105 {strides = array<i32>} : memref<72x256xf32, #tpu.memory_space<vmem>>, vector<8x256xf32>,
    %c0_66 = arith.constant 0 : index
    %c98 = arith.constant 98 : index
    %107 = vector.load %arg5[%c0_66, %c98] : memref<8x512xf32, #tpu.memory_space<vmem>>, vector<8x256xf32>
    %cst_67 = arith.constant 0.000000e+00 : f32
    %108 = vector.broadcast %cst_67 : f32 to vector<8x256xf32>
    %109 = arith.select %54, %107, %108 : vector<8x256xi1>, vector<8x256xf32>
    %c16_68 = arith.constant 16 : index
    %c0_69 = arith.constant 0 : index
    %110 = vector.load %arg6[%c16_68, %c0_69] : memref<72x256xf32, #tpu.memory_space<vmem>>, vector<8x256xf32>
    tpu.vector_store %arg6[%c16_68, %c0_69], %109 {strides = array<i32>} : memref<72x256xf32, #tpu.memory_space<vmem>>, vector<8x256xf32>,
    %c0_70 = arith.constant 0 : index
    %c126 = arith.constant 126 : index
    %111 = vector.load %arg5[%c0_70, %c126] : memref<8x512xf32, #tpu.memory_space<vmem>>, vector<8x256xf32>
    %cst_71 = arith.constant 0.000000e+00 : f32
    %112 = vector.broadcast %cst_71 : f32 to vector<8x256xf32>
    %113 = arith.select %27, %111, %112 : vector<8x256xi1>, vector<8x256xf32>
    %c24_72 = arith.constant 24 : index
    %c0_73 = arith.constant 0 : index
    %114 = vector.load %arg6[%c24_72, %c0_73] : memref<72x256xf32, #tpu.memory_space<vmem>>, vector<8x256xf32>
    tpu.vector_store %arg6[%c24_72, %c0_73], %113 {strides = array<i32>} : memref<72x256xf32, #tpu.memory_space<vmem>>, vector<8x256xf32>,
    %c0_74 = arith.constant 0 : index
    %c128_75 = arith.constant 128 : index
    %115 = vector.load %arg5[%c0_74, %c128_75] : memref<8x512xf32, #tpu.memory_space<vmem>>, vector<8x256xf32>
    %c32_76 = arith.constant 32 : index
    %c0_77 = arith.constant 0 : index
    %116 = vector.load %arg6[%c32_76, %c0_77] : memref<72x256xf32, #tpu.memory_space<vmem>>, vector<8x256xf32>
    tpu.vector_store %arg6[%c32_76, %c0_77], %115 {strides = array<i32>} : memref<72x256xf32, #tpu.memory_space<vmem>>, vector<8x256xf32>,
    %c0_78 = arith.constant 0 : index
    %c130 = arith.constant 130 : index
    %117 = vector.load %arg5[%c0_78, %c130] : memref<8x512xf32, #tpu.memory_space<vmem>>, vector<8x256xf32>
    %cst_79 = arith.constant 0.000000e+00 : f32
    %118 = vector.broadcast %cst_79 : f32 to vector<8x256xf32>
    %119 = arith.select %54, %117, %118 : vector<8x256xi1>, vector<8x256xf32>
    %c40_80 = arith.constant 40 : index
    %c0_81 = arith.constant 0 : index
    %120 = vector.load %arg6[%c40_80, %c0_81] : memref<72x256xf32, #tpu.memory_space<vmem>>, vector<8x256xf32>
    tpu.vector_store %arg6[%c40_80, %c0_81], %119 {strides = array<i32>} : memref<72x256xf32, #tpu.memory_space<vmem>>, vector<8x256xf32>,
    %c0_82 = arith.constant 0 : index
    %c158 = arith.constant 158 : index
    %121 = vector.load %arg5[%c0_82, %c158] : memref<8x512xf32, #tpu.memory_space<vmem>>, vector<8x256xf32>
    %cst_83 = arith.constant 0.000000e+00 : f32
    %122 = vector.broadcast %cst_83 : f32 to vector<8x256xf32>
    %123 = arith.select %27, %121, %122 : vector<8x256xi1>, vector<8x256xf32>
    %c48_84 = arith.constant 48 : index
    %c0_85 = arith.constant 0 : index
    %124 = vector.load %arg6[%c48_84, %c0_85] : memref<72x256xf32, #tpu.memory_space<vmem>>, vector<8x256xf32>
    tpu.vector_store %arg6[%c48_84, %c0_85], %123 {strides = array<i32>} : memref<72x256xf32, #tpu.memory_space<vmem>>, vector<8x256xf32>,
    %c0_86 = arith.constant 0 : index
    %c160 = arith.constant 160 : index
    %125 = vector.load %arg5[%c0_86, %c160] : memref<8x512xf32, #tpu.memory_space<vmem>>, vector<8x256xf32>
    %c56_87 = arith.constant 56 : index
    %c0_88 = arith.constant 0 : index
    %126 = vector.load %arg6[%c56_87, %c0_88] : memref<72x256xf32, #tpu.memory_space<vmem>>, vector<8x256xf32>
    tpu.vector_store %arg6[%c56_87, %c0_88], %125 {strides = array<i32>} : memref<72x256xf32, #tpu.memory_space<vmem>>, vector<8x256xf32>,
    %c0_89 = arith.constant 0 : index
    %c162 = arith.constant 162 : index
    %127 = vector.load %arg5[%c0_89, %c162] : memref<8x512xf32, #tpu.memory_space<vmem>>, vector<8x256xf32>
    %cst_90 = arith.constant 0.000000e+00 : f32
    %128 = vector.broadcast %cst_90 : f32 to vector<8x256xf32>
    %129 = arith.select %54, %127, %128 : vector<8x256xi1>, vector<8x256xf32>
    %c64_91 = arith.constant 64 : index
    %c0_92 = arith.constant 0 : index
    %130 = vector.load %arg6[%c64_91, %c0_92] : memref<72x256xf32, #tpu.memory_space<vmem>>, vector<8x256xf32>
    tpu.vector_store %arg6[%c64_91, %c0_92], %129 {strides = array<i32>} : memref<72x256xf32, #tpu.memory_space<vmem>>, vector<8x256xf32>,
    %c1 = arith.constant 1 : index
    %c0_93 = arith.constant 0 : index
    %c0_94 = arith.constant 0 : index
    %131 = vector.load %arg2[%c1, %c0_93, %c0_94] : memref<4x8x72xf32, #tpu.memory_space<vmem>>, vector<1x8x72xf32>
    %132 = vector.shape_cast %131 : vector<1x8x72xf32> to vector<8x72xf32>
    %c0_95 = arith.constant 0 : index
    %c0_96 = arith.constant 0 : index
    %133 = vector.load %arg6[%c0_95, %c0_96] : memref<72x256xf32, #tpu.memory_space<vmem>>, vector<72x256xf32>
    %cst_97 = arith.constant dense<0.000000e+00> : vector<8x256xf32>
    %134 = tpu.matmul %132, %133, %cst_97 {dimension_numbers = #tpu.dot_dimension_numbers<[1], [0], [0], [1], [0, 0, 1, 1], [], []>} : vector<8x72xf32>, vector<72x256xf32>, vector<8x256xf32> -> vector<8x256xf32>
    %c1_98 = arith.constant 1 : index
    %c0_99 = arith.constant 0 : index
    %c0_100 = arith.constant 0 : index
    %135 = vector.load %arg3[%c1_98, %c0_99, %c0_100] : memref<4x8x1xf32, #tpu.memory_space<vmem>>, vector<1x8x1xf32>
    %136 = vector.shape_cast %135 : vector<1x8x1xf32> to vector<8x1xf32>
    %137 = vector.broadcast %136 : vector<8x1xf32> to vector<8x256xf32>
    %138 = arith.addf %134, %137 : vector<8x256xf32>
    %139 = arith.addf %55, %138 : vector<8x256xf32>
    %cst_101 = arith.constant 0.000000e+00 : f32
    %140 = vector.broadcast %cst_101 : f32 to vector<8x256xf32>
    %141 = arith.cmpf ogt, %139, %140 : vector<8x256xf32>
    %cst_102 = arith.constant 1.000000e-01 : f32
    %142 = vector.broadcast %cst_102 : f32 to vector<8x256xf32>
    %143 = arith.mulf %142, %139 : vector<8x256xf32>
    %144 = arith.select %141, %139, %143 : vector<8x256xi1>, vector<8x256xf32>
    %c0_103 = arith.constant 0 : index
    %c128_104 = arith.constant 128 : index
    %145 = vector.load %arg5[%c0_103, %c128_104] : memref<8x512xf32, #tpu.memory_space<vmem>>, vector<8x256xf32>
    tpu.vector_store %arg5[%c0_103, %c128_104], %144 {strides = array<i32>} : memref<8x512xf32, #tpu.memory_space<vmem>>, vector<8x256xf32>,
    %c0_105 = arith.constant 0 : index
    %c111_106 = arith.constant 111 : index
    %146 = vector.load %arg5[%c0_105, %c111_106] : memref<8x512xf32, #tpu.memory_space<vmem>>, vector<8x256xf32>
    %cst_107 = arith.constant 0.000000e+00 : f32
    %147 = vector.broadcast %cst_107 : f32 to vector<8x256xf32>
    %148 = arith.select %36, %146, %147 : vector<8x256xi1>, vector<8x256xf32>
    %c0_108 = arith.constant 0 : index
    %c0_109 = arith.constant 0 : index
    %149 = vector.load %arg6[%c0_108, %c0_109] : memref<72x256xf32, #tpu.memory_space<vmem>>, vector<8x256xf32>
    tpu.vector_store %arg6[%c0_108, %c0_109], %148 {strides = array<i32>} : memref<72x256xf32, #tpu.memory_space<vmem>>, vector<8x256xf32>,
    %c0_110 = arith.constant 0 : index
    %c112_111 = arith.constant 112 : index
    %150 = vector.load %arg5[%c0_110, %c112_111] : memref<8x512xf32, #tpu.memory_space<vmem>>, vector<8x256xf32>
    %c8_112 = arith.constant 8 : index
    %c0_113 = arith.constant 0 : index
    %151 = vector.load %arg6[%c8_112, %c0_113] : memref<72x256xf32, #tpu.memory_space<vmem>>, vector<8x256xf32>
    tpu.vector_store %arg6[%c8_112, %c0_113], %150 {strides = array<i32>} : memref<72x256xf32, #tpu.memory_space<vmem>>, vector<8x256xf32>,
    %c0_114 = arith.constant 0 : index
    %c113_115 = arith.constant 113 : index
    %152 = vector.load %arg5[%c0_114, %c113_115] : memref<8x512xf32, #tpu.memory_space<vmem>>, vector<8x256xf32>
    %cst_116 = arith.constant 0.000000e+00 : f32
    %153 = vector.broadcast %cst_116 : f32 to vector<8x256xf32>
    %154 = arith.select %45, %152, %153 : vector<8x256xi1>, vector<8x256xf32>
    %c16_117 = arith.constant 16 : index
    %c0_118 = arith.constant 0 : index
    %155 = vector.load %arg6[%c16_117, %c0_118] : memref<72x256xf32, #tpu.memory_space<vmem>>, vector<8x256xf32>
    tpu.vector_store %arg6[%c16_117, %c0_118], %154 {strides = array<i32>} : memref<72x256xf32, #tpu.memory_space<vmem>>, vector<8x256xf32>,
    %c0_119 = arith.constant 0 : index
    %c127_120 = arith.constant 127 : index
    %156 = vector.load %arg5[%c0_119, %c127_120] : memref<8x512xf32, #tpu.memory_space<vmem>>, vector<8x256xf32>
    %cst_121 = arith.constant 0.000000e+00 : f32
    %157 = vector.broadcast %cst_121 : f32 to vector<8x256xf32>
    %158 = arith.select %36, %156, %157 : vector<8x256xi1>, vector<8x256xf32>
    %c24_122 = arith.constant 24 : index
    %c0_123 = arith.constant 0 : index
    %159 = vector.load %arg6[%c24_122, %c0_123] : memref<72x256xf32, #tpu.memory_space<vmem>>, vector<8x256xf32>
    tpu.vector_store %arg6[%c24_122, %c0_123], %158 {strides = array<i32>} : memref<72x256xf32, #tpu.memory_space<vmem>>, vector<8x256xf32>,
    %c0_124 = arith.constant 0 : index
    %c128_125 = arith.constant 128 : index
    %160 = vector.load %arg5[%c0_124, %c128_125] : memref<8x512xf32, #tpu.memory_space<vmem>>, vector<8x256xf32>
    %c32_126 = arith.constant 32 : index
    %c0_127 = arith.constant 0 : index
    %161 = vector.load %arg6[%c32_126, %c0_127] : memref<72x256xf32, #tpu.memory_space<vmem>>, vector<8x256xf32>
    tpu.vector_store %arg6[%c32_126, %c0_127], %160 {strides = array<i32>} : memref<72x256xf32, #tpu.memory_space<vmem>>, vector<8x256xf32>,
    %c0_128 = arith.constant 0 : index
    %c129_129 = arith.constant 129 : index
    %162 = vector.load %arg5[%c0_128, %c129_129] : memref<8x512xf32, #tpu.memory_space<vmem>>, vector<8x256xf32>
    %cst_130 = arith.constant 0.000000e+00 : f32
    %163 = vector.broadcast %cst_130 : f32 to vector<8x256xf32>
    %164 = arith.select %45, %162, %163 : vector<8x256xi1>, vector<8x256xf32>
    %c40_131 = arith.constant 40 : index
    %c0_132 = arith.constant 0 : index
    %165 = vector.load %arg6[%c40_131, %c0_132] : memref<72x256xf32, #tpu.memory_space<vmem>>, vector<8x256xf32>
    tpu.vector_store %arg6[%c40_131, %c0_132], %164 {strides = array<i32>} : memref<72x256xf32, #tpu.memory_space<vmem>>, vector<8x256xf32>,
    %c0_133 = arith.constant 0 : index
    %c143_134 = arith.constant 143 : index
    %166 = vector.load %arg5[%c0_133, %c143_134] : memref<8x512xf32, #tpu.memory_space<vmem>>, vector<8x256xf32>
    %cst_135 = arith.constant 0.000000e+00 : f32
    %167 = vector.broadcast %cst_135 : f32 to vector<8x256xf32>
    %168 = arith.select %36, %166, %167 : vector<8x256xi1>, vector<8x256xf32>
    %c48_136 = arith.constant 48 : index
    %c0_137 = arith.constant 0 : index
    %169 = vector.load %arg6[%c48_136, %c0_137] : memref<72x256xf32, #tpu.memory_space<vmem>>, vector<8x256xf32>
    tpu.vector_store %arg6[%c48_136, %c0_137], %168 {strides = array<i32>} : memref<72x256xf32, #tpu.memory_space<vmem>>, vector<8x256xf32>,
    %c0_138 = arith.constant 0 : index
    %c144_139 = arith.constant 144 : index
    %170 = vector.load %arg5[%c0_138, %c144_139] : memref<8x512xf32, #tpu.memory_space<vmem>>, vector<8x256xf32>
    %c56_140 = arith.constant 56 : index
    %c0_141 = arith.constant 0 : index
    %171 = vector.load %arg6[%c56_140, %c0_141] : memref<72x256xf32, #tpu.memory_space<vmem>>, vector<8x256xf32>
    tpu.vector_store %arg6[%c56_140, %c0_141], %170 {strides = array<i32>} : memref<72x256xf32, #tpu.memory_space<vmem>>, vector<8x256xf32>,
    %c0_142 = arith.constant 0 : index
    %c145_143 = arith.constant 145 : index
    %172 = vector.load %arg5[%c0_142, %c145_143] : memref<8x512xf32, #tpu.memory_space<vmem>>, vector<8x256xf32>
    %cst_144 = arith.constant 0.000000e+00 : f32
    %173 = vector.broadcast %cst_144 : f32 to vector<8x256xf32>
    %174 = arith.select %45, %172, %173 : vector<8x256xi1>, vector<8x256xf32>
    %c64_145 = arith.constant 64 : index
    %c0_146 = arith.constant 0 : index
    %175 = vector.load %arg6[%c64_145, %c0_146] : memref<72x256xf32, #tpu.memory_space<vmem>>, vector<8x256xf32>
    tpu.vector_store %arg6[%c64_145, %c0_146], %174 {strides = array<i32>} : memref<72x256xf32, #tpu.memory_space<vmem>>, vector<8x256xf32>,
    %c2 = arith.constant 2 : index
    %c0_147 = arith.constant 0 : index
    %c0_148 = arith.constant 0 : index
    %176 = vector.load %arg2[%c2, %c0_147, %c0_148] : memref<4x8x72xf32, #tpu.memory_space<vmem>>, vector<1x8x72xf32>
    %177 = vector.shape_cast %176 : vector<1x8x72xf32> to vector<8x72xf32>
    %c0_149 = arith.constant 0 : index
    %c0_150 = arith.constant 0 : index
    %178 = vector.load %arg6[%c0_149, %c0_150] : memref<72x256xf32, #tpu.memory_space<vmem>>, vector<72x256xf32>
    %cst_151 = arith.constant dense<0.000000e+00> : vector<8x256xf32>
    %179 = tpu.matmul %177, %178, %cst_151 {dimension_numbers = #tpu.dot_dimension_numbers<[1], [0], [0], [1], [0, 0, 1, 1], [], []>} : vector<8x72xf32>, vector<72x256xf32>, vector<8x256xf32> -> vector<8x256xf32>
    %c2_152 = arith.constant 2 : index
    %c0_153 = arith.constant 0 : index
    %c0_154 = arith.constant 0 : index
    %180 = vector.load %arg3[%c2_152, %c0_153, %c0_154] : memref<4x8x1xf32, #tpu.memory_space<vmem>>, vector<1x8x1xf32>
    %181 = vector.shape_cast %180 : vector<1x8x1xf32> to vector<8x1xf32>
    %182 = vector.broadcast %181 : vector<8x1xf32> to vector<8x256xf32>
    %183 = arith.addf %179, %182 : vector<8x256xf32>
    %cst_155 = arith.constant 0.000000e+00 : f32
    %184 = vector.broadcast %cst_155 : f32 to vector<8x256xf32>
    %185 = arith.cmpf ogt, %183, %184 : vector<8x256xf32>
    %cst_156 = arith.constant 1.000000e-01 : f32
    %186 = vector.broadcast %cst_156 : f32 to vector<8x256xf32>
    %187 = arith.mulf %186, %183 : vector<8x256xf32>
    %188 = arith.select %185, %183, %187 : vector<8x256xi1>, vector<8x256xf32>
    %c0_157 = arith.constant 0 : index
    %c128_158 = arith.constant 128 : index
    %189 = vector.load %arg5[%c0_157, %c128_158] : memref<8x512xf32, #tpu.memory_space<vmem>>, vector<8x256xf32>
    tpu.vector_store %arg5[%c0_157, %c128_158], %188 {strides = array<i32>} : memref<8x512xf32, #tpu.memory_space<vmem>>, vector<8x256xf32>,
    %c0_159 = arith.constant 0 : index
    %c94_160 = arith.constant 94 : index
    %190 = vector.load %arg5[%c0_159, %c94_160] : memref<8x512xf32, #tpu.memory_space<vmem>>, vector<8x256xf32>
    %cst_161 = arith.constant 0.000000e+00 : f32
    %191 = vector.broadcast %cst_161 : f32 to vector<8x256xf32>
    %192 = arith.select %27, %190, %191 : vector<8x256xi1>, vector<8x256xf32>
    %c0_162 = arith.constant 0 : index
    %c0_163 = arith.constant 0 : index
    %193 = vector.load %arg6[%c0_162, %c0_163] : memref<72x256xf32, #tpu.memory_space<vmem>>, vector<8x256xf32>
    tpu.vector_store %arg6[%c0_162, %c0_163], %192 {strides = array<i32>} : memref<72x256xf32, #tpu.memory_space<vmem>>, vector<8x256xf32>,
    %c0_164 = arith.constant 0 : index
    %c96_165 = arith.constant 96 : index
    %194 = vector.load %arg5[%c0_164, %c96_165] : memref<8x512xf32, #tpu.memory_space<vmem>>, vector<8x256xf32>
    %c8_166 = arith.constant 8 : index
    %c0_167 = arith.constant 0 : index
    %195 = vector.load %arg6[%c8_166, %c0_167] : memref<72x256xf32, #tpu.memory_space<vmem>>, vector<8x256xf32>
    tpu.vector_store %arg6[%c8_166, %c0_167], %194 {strides = array<i32>} : memref<72x256xf32, #tpu.memory_space<vmem>>, vector<8x256xf32>,
    %c0_168 = arith.constant 0 : index
    %c98_169 = arith.constant 98 : index
    %196 = vector.load %arg5[%c0_168, %c98_169] : memref<8x512xf32, #tpu.memory_space<vmem>>, vector<8x256xf32>
    %cst_170 = arith.constant 0.000000e+00 : f32
    %197 = vector.broadcast %cst_170 : f32 to vector<8x256xf32>
    %198 = arith.select %54, %196, %197 : vector<8x256xi1>, vector<8x256xf32>
    %c16_171 = arith.constant 16 : index
    %c0_172 = arith.constant 0 : index
    %199 = vector.load %arg6[%c16_171, %c0_172] : memref<72x256xf32, #tpu.memory_space<vmem>>, vector<8x256xf32>
    tpu.vector_store %arg6[%c16_171, %c0_172], %198 {strides = array<i32>} : memref<72x256xf32, #tpu.memory_space<vmem>>, vector<8x256xf32>,
    %c0_173 = arith.constant 0 : index
    %c126_174 = arith.constant 126 : index
    %200 = vector.load %arg5[%c0_173, %c126_174] : memref<8x512xf32, #tpu.memory_space<vmem>>, vector<8x256xf32>
    %cst_175 = arith.constant 0.000000e+00 : f32
    %201 = vector.broadcast %cst_175 : f32 to vector<8x256xf32>
    %202 = arith.select %27, %200, %201 : vector<8x256xi1>, vector<8x256xf32>
    %c24_176 = arith.constant 24 : index
    %c0_177 = arith.constant 0 : index
    %203 = vector.load %arg6[%c24_176, %c0_177] : memref<72x256xf32, #tpu.memory_space<vmem>>, vector<8x256xf32>
    tpu.vector_store %arg6[%c24_176, %c0_177], %202 {strides = array<i32>} : memref<72x256xf32, #tpu.memory_space<vmem>>, vector<8x256xf32>,
    %c0_178 = arith.constant 0 : index
    %c128_179 = arith.constant 128 : index
    %204 = vector.load %arg5[%c0_178, %c128_179] : memref<8x512xf32, #tpu.memory_space<vmem>>, vector<8x256xf32>
    %c32_180 = arith.constant 32 : index
    %c0_181 = arith.constant 0 : index
    %205 = vector.load %arg6[%c32_180, %c0_181] : memref<72x256xf32, #tpu.memory_space<vmem>>, vector<8x256xf32>
    tpu.vector_store %arg6[%c32_180, %c0_181], %204 {strides = array<i32>} : memref<72x256xf32, #tpu.memory_space<vmem>>, vector<8x256xf32>,
    %c0_182 = arith.constant 0 : index
    %c130_183 = arith.constant 130 : index
    %206 = vector.load %arg5[%c0_182, %c130_183] : memref<8x512xf32, #tpu.memory_space<vmem>>, vector<8x256xf32>
    %cst_184 = arith.constant 0.000000e+00 : f32
    %207 = vector.broadcast %cst_184 : f32 to vector<8x256xf32>
    %208 = arith.select %54, %206, %207 : vector<8x256xi1>, vector<8x256xf32>
    %c40_185 = arith.constant 40 : index
    %c0_186 = arith.constant 0 : index
    %209 = vector.load %arg6[%c40_185, %c0_186] : memref<72x256xf32, #tpu.memory_space<vmem>>, vector<8x256xf32>
    tpu.vector_store %arg6[%c40_185, %c0_186], %208 {strides = array<i32>} : memref<72x256xf32, #tpu.memory_space<vmem>>, vector<8x256xf32>,
    %c0_187 = arith.constant 0 : index
    %c158_188 = arith.constant 158 : index
    %210 = vector.load %arg5[%c0_187, %c158_188] : memref<8x512xf32, #tpu.memory_space<vmem>>, vector<8x256xf32>
    %cst_189 = arith.constant 0.000000e+00 : f32
    %211 = vector.broadcast %cst_189 : f32 to vector<8x256xf32>
    %212 = arith.select %27, %210, %211 : vector<8x256xi1>, vector<8x256xf32>
    %c48_190 = arith.constant 48 : index
    %c0_191 = arith.constant 0 : index
    %213 = vector.load %arg6[%c48_190, %c0_191] : memref<72x256xf32, #tpu.memory_space<vmem>>, vector<8x256xf32>
    tpu.vector_store %arg6[%c48_190, %c0_191], %212 {strides = array<i32>} : memref<72x256xf32, #tpu.memory_space<vmem>>, vector<8x256xf32>,
    %c0_192 = arith.constant 0 : index
    %c160_193 = arith.constant 160 : index
    %214 = vector.load %arg5[%c0_192, %c160_193] : memref<8x512xf32, #tpu.memory_space<vmem>>, vector<8x256xf32>
    %c56_194 = arith.constant 56 : index
    %c0_195 = arith.constant 0 : index
    %215 = vector.load %arg6[%c56_194, %c0_195] : memref<72x256xf32, #tpu.memory_space<vmem>>, vector<8x256xf32>
    tpu.vector_store %arg6[%c56_194, %c0_195], %214 {strides = array<i32>} : memref<72x256xf32, #tpu.memory_space<vmem>>, vector<8x256xf32>,
    %c0_196 = arith.constant 0 : index
    %c162_197 = arith.constant 162 : index
    %216 = vector.load %arg5[%c0_196, %c162_197] : memref<8x512xf32, #tpu.memory_space<vmem>>, vector<8x256xf32>
    %cst_198 = arith.constant 0.000000e+00 : f32
    %217 = vector.broadcast %cst_198 : f32 to vector<8x256xf32>
    %218 = arith.select %54, %216, %217 : vector<8x256xi1>, vector<8x256xf32>
    %c64_199 = arith.constant 64 : index
    %c0_200 = arith.constant 0 : index
    %219 = vector.load %arg6[%c64_199, %c0_200] : memref<72x256xf32, #tpu.memory_space<vmem>>, vector<8x256xf32>
    tpu.vector_store %arg6[%c64_199, %c0_200], %218 {strides = array<i32>} : memref<72x256xf32, #tpu.memory_space<vmem>>, vector<8x256xf32>,
    %c3 = arith.constant 3 : index
    %c0_201 = arith.constant 0 : index
    %c0_202 = arith.constant 0 : index
    %220 = vector.load %arg2[%c3, %c0_201, %c0_202] : memref<4x8x72xf32, #tpu.memory_space<vmem>>, vector<1x8x72xf32>
    %221 = vector.shape_cast %220 : vector<1x8x72xf32> to vector<8x72xf32>
    %c0_203 = arith.constant 0 : index
    %c0_204 = arith.constant 0 : index
    %222 = vector.load %arg6[%c0_203, %c0_204] : memref<72x256xf32, #tpu.memory_space<vmem>>, vector<72x256xf32>
    %cst_205 = arith.constant dense<0.000000e+00> : vector<8x256xf32>
    %223 = tpu.matmul %221, %222, %cst_205 {dimension_numbers = #tpu.dot_dimension_numbers<[1], [0], [0], [1], [0, 0, 1, 1], [], []>} : vector<8x72xf32>, vector<72x256xf32>, vector<8x256xf32> -> vector<8x256xf32>
    %c3_206 = arith.constant 3 : index
    %c0_207 = arith.constant 0 : index
    %c0_208 = arith.constant 0 : index
    %224 = vector.load %arg3[%c3_206, %c0_207, %c0_208] : memref<4x8x1xf32, #tpu.memory_space<vmem>>, vector<1x8x1xf32>
    %225 = vector.shape_cast %224 : vector<1x8x1xf32> to vector<8x1xf32>
    %226 = vector.broadcast %225 : vector<8x1xf32> to vector<8x256xf32>
    %227 = arith.addf %223, %226 : vector<8x256xf32>
    %228 = arith.addf %144, %227 : vector<8x256xf32>
    %cst_209 = arith.constant 0.000000e+00 : f32
    %229 = vector.broadcast %cst_209 : f32 to vector<8x256xf32>
    %230 = arith.cmpf ogt, %228, %229 : vector<8x256xf32>
    %cst_210 = arith.constant 1.000000e-01 : f32
    %231 = vector.broadcast %cst_210 : f32 to vector<8x256xf32>
    %232 = arith.mulf %231, %228 : vector<8x256xf32>
    %233 = arith.select %230, %228, %232 : vector<8x256xi1>, vector<8x256xf32>
    %234 = arith.addf %233, %55 : vector<8x256xf32>
    %c0_211 = arith.constant 0 : index
    %c0_212 = arith.constant 0 : index
    %235 = vector.load %arg4[%c0_211, %c0_212] : memref<8x256xf32, #tpu.memory_space<vmem>>, vector<8x256xf32>
    tpu.vector_store %arg4[%c0_211, %c0_212], %234 {strides = array<i32>} : memref<8x256xf32, #tpu.memory_space<vmem>>, vector<8x256xf32>,
    return
  }
  func.func @transform_0(%arg0: i32) -> (i32, i32) {
    %c0_i32 = arith.constant 0 : i32
    %c0_i32_0 = arith.constant 0 : i32
    %c0_i32_1 = arith.constant 0 : i32
    return %c0_i32, %c0_i32_0 : i32, i32
  }
  func.func @transform_1(%arg0: i32) -> (i32, i32, i32) {
    %c0_i32 = arith.constant 0 : i32
    %c0_i32_0 = arith.constant 0 : i32
    %c0_i32_1 = arith.constant 0 : i32
    %c0_i32_2 = arith.constant 0 : i32
    return %c0_i32, %c0_i32_0, %c0_i32_1 : i32, i32, i32
  }
  func.func @transform_2(%arg0: i32) -> (i32, i32, i32) {
    %c0_i32 = arith.constant 0 : i32
    %c0_i32_0 = arith.constant 0 : i32
    %c0_i32_1 = arith.constant 0 : i32
    %c0_i32_2 = arith.constant 0 : i32
    return %c0_i32, %c0_i32_0, %c0_i32_1 : i32, i32, i32
  }
  func.func @transform_3(%arg0: i32) -> (i32, i32) {
    %c0_i32 = arith.constant 0 : i32
    %c0_i32_0 = arith.constant 0 : i32
    %c0_i32_1 = arith.constant 0 : i32
    return %c0_i32, %c0_i32_0 : i32, i32
  }
}

</mosaic_0001>

<llo_original>
// kernel: tpu_custom_call.1
$region0: #{tpu_custom_call.1}
  #allocation0 [shape = 'u32[]', space=smem, size = 0x4, offset = 0x4, fixed_abs, tag = 'smem constant byte address 0x4 - core index']
  #allocation1 [shape = 'u32[72,128]{1,0:T(1,128)}', space=vmem, size = 0x9000, scoped, tag = 'internal scratch']
  #allocation2 [shape = 'f32[8,512]{1,0:T(8,128)}', space=vmem, size = 0x4000, scoped, tag = 'scratch operand']
  #allocation3 [shape = 'f32[72,256]{1,0:T(8,128)}', space=vmem, size = 0x12000, scoped, tag = 'scratch operand']
  %s0 = inlined_call_operand.hbm [shape: f32[8,256], index: 0, kind: input, shape index: {}]
  %s1 = inlined_call_operand.vmem [shape: f32[4,8,72], index: 1, kind: input, shape index: {}]
  %s2 = inlined_call_operand.vmem [shape: f32[4,8,1], index: 2, kind: input, shape index: {}]
  %s3 = inlined_call_operand.hbm [shape: f32[8,256], index: 3, kind: output, shape index: {}]
  %s4 = sld [smem:[#allocation0]]
  $region26: #{tpu_custom_call.1} parent=0
    _
  %s6 = ssub.s32 1, %s4
  %s7 = scalar_select 0, %s6, %s4
  $region1: #{tpu_custom_call.1} parent=0
    #allocation4 [shape = 'u8[8192]{0}', space=vmem, size = 0x2000, scoped, tag = 'input window, operand 0, single buffered']
    #allocation5 [shape = 's32[1]{0}', space=sflag, size = 0x4, scoped, tag = 'scoped memory for tpu_custom_call.1']
    #allocation6 [shape = 's32[1]{0}', space=sflag, size = 0x4, scoped, tag = 'scoped memory for tpu_custom_call.1']
    #allocation7 [shape = 'u8[8192]{0}', space=vmem, size = 0x2000, scoped, tag = 'output window, operand 0, single buffered']
    %8 = vsyncpa [#allocation5], 0
    %9 = vsyncpa [#allocation6], 0
    // Predicated region
    $region2: #{tpu_custom_call.1} parent=1 // pred_check
      _
    $region3: #{tpu_custom_call.1} parent=1 // pred_check_branch
      %11 = sbr.rel (0) target = $region5
    $region4: #{tpu_custom_call.1} parent=1 // pred_region
      %13 = vsyncadd [#allocation5], 0
      %s15 = sshll.u32 %s0, 4
      %s16 = int_to_ptr.hbm [resolvable:$true] %s15
      %s17 = sshll.u32 [#allocation4], 4
      %s18 = int_to_ptr.vmem [resolvable:$true] %s17
      %20 = dma.hbm_to_vmem [thread:$0]  %s16, 256, %s18, [#allocation5]
    $region5: #{tpu_custom_call.1} parent=1 // pred_fallthru
      _
    // Predicated region
    $region6: #{tpu_custom_call.1} parent=1 // pred_check
      _
    $region7: #{tpu_custom_call.1} parent=1 // pred_check_branch
      %22 = sbr.rel (0) target = $region9
    $region8: #{tpu_custom_call.1} parent=1 // pred_region
      _
    $region9: #{tpu_custom_call.1} parent=1 // pred_fallthru
      _
    // Predicated region
    $region10: #{tpu_custom_call.1} parent=1 // pred_check
      _
    $region11: #{tpu_custom_call.1} parent=1 // pred_check_branch
      %24 = sbr.rel (0) target = $region13
    $region12: #{tpu_custom_call.1} parent=1 // pred_region
      _
    $region13: #{tpu_custom_call.1} parent=1 // pred_fallthru
      _
    // Predicated region
    $region14: #{tpu_custom_call.1} parent=1 // pred_check
      _
    $region15: #{tpu_custom_call.1} parent=1 // pred_check_branch
      %26 = sbr.rel (0) target = $region17
    $region16: #{tpu_custom_call.1} parent=1 // pred_region
      %28 = dma.done [#allocation5], 256
    $region17: #{tpu_custom_call.1} parent=1 // pred_fallthru
      _
    %29 = vst [vmem:[#allocation2] sm:$0xff] 0.0
    %30 = vst [vmem:[#allocation2 + $0x8] sm:$0xff] 0.0
    %31 = vst [vmem:[#allocation2 + $0x10] sm:$0xff] 0.0
    %32 = vst [vmem:[#allocation2 + $0x18] sm:$0xff] 0.0
    %v33 = vlaneseq
    %v34 = vand.u32 %v33, 127
    %v35 = vadd.s32 %v34, 128
    %vm36 = vcmp.lt.s32.totalorder %v34, 0
    %v37 = vsub.s32 0, %v34
    %v38 = vsel %vm36, %v37, %v34
    %v39 = vshrl.u32 %v38, 4
    %v40 = vand.u32 %v38, 15
    %v41 = vsub.s32 0, %v40
    %v42 = vsel %vm36, %v41, %v40
    %vm43 = vcmp.lt.s32.totalorder %v35, 0
    %v44 = vsub.s32 0, %v35
    %v45 = vsel %vm43, %v44, %v35
    %v46 = vshrl.u32 %v45, 4
    %v47 = vand.u32 %v45, 15
    %v48 = vsub.s32 0, %v47
    %v49 = vsel %vm43, %v48, %v47
    %vm50 = vcmp.ne.s32.totalorder %v42, 0
    %vm51 = vcmp.ne.s32.totalorder %v49, 0
    %vm52 = vcmp.lt.s32.totalorder %v42, 0
    %vm53 = vcmp.lt.s32.totalorder %v49, 0
    %vm54 = vmand %vm52, %vm50
    %vm55 = vmand %vm53, %vm51
    %v56 = vadd.s32 %v42, 16
    %v57 = vadd.s32 %v49, 16
    %v58 = vsel %vm54, %v56, %v42
    %v59 = vsel %vm55, %v57, %v49
    %v60 = vadd.s32 %v58, 4294967294
    %v61 = vadd.s32 %v59, 4294967294
    %vm62 = vcmp.ge.s32.totalorder %v60, 0
    %vm63 = vcmp.ge.s32.totalorder %v61, 0
    %vm64 = vcmp.lt.s32.totalorder %v60, 16
    %vm65 = vcmp.lt.s32.totalorder %v61, 16
    %vm66 = vmand %vm62, %vm64
    %vm67 = vmand %vm63, %vm65
    %v68 = vadd.s32 %v58, 4294967295
    %v69 = vadd.s32 %v59, 4294967295
    %vm70 = vcmp.ge.s32.totalorder %v68, 0
    %vm71 = vcmp.ge.s32.totalorder %v69, 0
    %vm72 = vcmp.lt.s32.totalorder %v68, 16
    %vm73 = vcmp.lt.s32.totalorder %v69, 16
    %vm74 = vmand %vm70, %vm72
    %vm75 = vmand %vm71, %vm73
    %v76 = vadd.s32 %v58, 1
    %v77 = vadd.s32 %v59, 1
    %vm78 = vcmp.ge.s32.totalorder %v76, 0
    %vm79 = vcmp.ge.s32.totalorder %v77, 0
    %vm80 = vcmp.lt.s32.totalorder %v76, 16
    %vm81 = vcmp.lt.s32.totalorder %v77, 16
    %vm82 = vmand %vm78, %vm80
    %vm83 = vmand %vm79, %vm81
    %v84 = vadd.s32 %v58, 2
    %v85 = vadd.s32 %v59, 2
    %vm86 = vcmp.ge.s32.totalorder %v84, 0
    %vm87 = vcmp.ge.s32.totalorder %v85, 0
    %vm88 = vcmp.lt.s32.totalorder %v84, 16
    %vm89 = vcmp.lt.s32.totalorder %v85, 16
    %vm90 = vmand %vm86, %vm88
    %vm91 = vmand %vm87, %vm89
    %v92 = vld [vmem:[#allocation4] sm:$0xff]
    %v93 = vld [vmem:[#allocation4 + $0x8] sm:$0xff]
    %94 = vst [vmem:[#allocation2 + $0x8] sm:$0xff] %v92
    %95 = vst [vmem:[#allocation2 + $0x10] sm:$0xff] %v93
    %v96 = vld [vmem:[#allocation2] sm:$0xff]
    %v97 = vld [vmem:[#allocation2 + $0x8] sm:$0xff]
    %v98 = vld [vmem:[#allocation2 + $0x10] sm:$0xff]
    %102 = vrot.lane.b32.xlu0 %v96, 17
    %v103 = vpop.permute.xlu0 %102
    %104 = vrot.lane.b32.xlu0 %v97, 17
    %v105 = vpop.permute.xlu0 %104
    %106 = vrot.lane.b32.xlu0 %v98, 17
    %v107 = vpop.permute.xlu0 %106
    %vm108 = vcmask 138240
    %v109 = vsel %vm108, %v103, %v105
    %v110 = vsel %vm108, %v105, %v107
    %v113 = vsel %vm74, %v109, 0.0
    %v114 = vsel %vm75, %v110, 0.0
    %115 = vst [vmem:[#allocation3] sm:$0xff] %v113
    %116 = vst [vmem:[#allocation3 + $0x8] sm:$0xff] %v114
    %v117 = vld [vmem:[#allocation2] sm:$0xff]
    %v118 = vld [vmem:[#allocation2 + $0x8] sm:$0xff]
    %v119 = vld [vmem:[#allocation2 + $0x10] sm:$0xff]
    %123 = vrot.lane.b32.xlu0 %v117, 16
    %v124 = vpop.permute.xlu0 %123
    %125 = vrot.lane.b32.xlu0 %v118, 16
    %v126 = vpop.permute.xlu0 %125
    %127 = vrot.lane.b32.xlu0 %v119, 16
    %v128 = vpop.permute.xlu0 %127
    %vm129 = vcmask 130048
    %v130 = vsel %vm129, %v124, %v126
    %v131 = vsel %vm129, %v126, %v128
    %134 = vst [vmem:[#allocation3 + $0x10] sm:$0xff] %v130
    %135 = vst [vmem:[#allocation3 + $0x18] sm:$0xff] %v131
    %v136 = vld [vmem:[#allocation2] sm:$0xff]
    %v137 = vld [vmem:[#allocation2 + $0x8] sm:$0xff]
    %v138 = vld [vmem:[#allocation2 + $0x10] sm:$0xff]
    %142 = vrot.lane.b32.xlu0 %v136, 15
    %v143 = vpop.permute.xlu0 %142
    %144 = vrot.lane.b32.xlu0 %v137, 15
    %v145 = vpop.permute.xlu0 %144
    %146 = vrot.lane.b32.xlu0 %v138, 15
    %v147 = vpop.permute.xlu0 %146
    %vm148 = vcmask 121856
    %v149 = vsel %vm148, %v143, %v145
    %v150 = vsel %vm148, %v145, %v147
    %v153 = vsel %vm82, %v149, 0.0
    %v154 = vsel %vm83, %v150, 0.0
    %155 = vst [vmem:[#allocation3 + $0x20] sm:$0xff] %v153
    %156 = vst [vmem:[#allocation3 + $0x28] sm:$0xff] %v154
    %v157 = vld [vmem:[#allocation2] sm:$0xff]
    %v158 = vld [vmem:[#allocation2 + $0x8] sm:$0xff]
    %v159 = vld [vmem:[#allocation2 + $0x10] sm:$0xff]
    %163 = vrot.lane.b32.xlu0 %v157, 1
    %v164 = vpop.permute.xlu0 %163
    %165 = vrot.lane.b32.xlu0 %v158, 1
    %v166 = vpop.permute.xlu0 %165
    %167 = vrot.lane.b32.xlu0 %v159, 1
    %v168 = vpop.permute.xlu0 %167
    %vm169 = vcmask 7168
    %v170 = vsel %vm169, %v164, %v166
    %v171 = vsel %vm169, %v166, %v168
    %v174 = vsel %vm74, %v170, 0.0
    %v175 = vsel %vm75, %v171, 0.0
    %176 = vst [vmem:[#allocation3 + $0x30] sm:$0xff] %v174
    %177 = vst [vmem:[#allocation3 + $0x38] sm:$0xff] %v175
    %v178 = vld [vmem:[#allocation2 + $0x8] sm:$0xff]
    %v179 = vld [vmem:[#allocation2 + $0x10] sm:$0xff]
    %180 = vst [vmem:[#allocation3 + $0x40] sm:$0xff] %v178
    %181 = vst [vmem:[#allocation3 + $0x48] sm:$0xff] %v179
    %v182 = vld [vmem:[#allocation2 + $0x8] sm:$0xff]
    %v183 = vld [vmem:[#allocation2 + $0x10] sm:$0xff]
    %v184 = vld [vmem:[#allocation2 + $0x18] sm:$0xff]
    %188 = vrot.lane.b32.xlu0 %v182, 127
    %v189 = vpop.permute.xlu0 %188
    %190 = vrot.lane.b32.xlu0 %v183, 127
    %v191 = vpop.permute.xlu0 %190
    %192 = vrot.lane.b32.xlu0 %v184, 127
    %v193 = vpop.permute.xlu0 %192
    %vm194 = vcmask 1039360
    %v195 = vsel %vm194, %v189, %v191
    %v196 = vsel %vm194, %v191, %v193
    %v199 = vsel %vm82, %v195, 0.0
    %v200 = vsel %vm83, %v196, 0.0
    %201 = vst [vmem:[#allocation3 + $0x50] sm:$0xff] %v199
    %202 = vst [vmem:[#allocation3 + $0x58] sm:$0xff] %v200
    %v203 = vld [vmem:[#allocation2 + $0x8] sm:$0xff]
    %v204 = vld [vmem:[#allocation2 + $0x10] sm:$0xff]
    %v205 = vld [vmem:[#allocation2 + $0x18] sm:$0xff]
    %209 = vrot.lane.b32.xlu0 %v203, 113
    %v210 = vpop.permute.xlu0 %209
    %211 = vrot.lane.b32.xlu0 %v204, 113
    %v212 = vpop.permute.xlu0 %211
    %213 = vrot.lane.b32.xlu0 %v205, 113
    %v214 = vpop.permute.xlu0 %213
    %vm215 = vcmask 924672
    %v216 = vsel %vm215, %v210, %v212
    %v217 = vsel %vm215, %v212, %v214
    %v220 = vsel %vm74, %v216, 0.0
    %v221 = vsel %vm75, %v217, 0.0
    %222 = vst [vmem:[#allocation3 + $0x60] sm:$0xff] %v220
    %223 = vst [vmem:[#allocation3 + $0x68] sm:$0xff] %v221
    %v224 = vld [vmem:[#allocation2 + $0x8] sm:$0xff]
    %v225 = vld [vmem:[#allocation2 + $0x10] sm:$0xff]
    %v226 = vld [vmem:[#allocation2 + $0x18] sm:$0xff]
    %230 = vrot.lane.b32.xlu0 %v224, 112
    %v231 = vpop.permute.xlu0 %230
    %232 = vrot.lane.b32.xlu0 %v225, 112
    %v233 = vpop.permute.xlu0 %232
    %234 = vrot.lane.b32.xlu0 %v226, 112
    %v235 = vpop.permute.xlu0 %234
    %vm236 = vcmask 916480
    %v237 = vsel %vm236, %v231, %v233
    %v238 = vsel %vm236, %v233, %v235
    %241 = vst [vmem:[#allocation3 + $0x70] sm:$0xff] %v237
    %242 = vst [vmem:[#allocation3 + $0x78] sm:$0xff] %v238
    %v243 = vld [vmem:[#allocation2 + $0x8] sm:$0xff]
    %v244 = vld [vmem:[#allocation2 + $0x10] sm:$0xff]
    %v245 = vld [vmem:[#allocation2 + $0x18] sm:$0xff]
    %249 = vrot.lane.b32.xlu0 %v243, 111
    %v250 = vpop.permute.xlu0 %249
    %251 = vrot.lane.b32.xlu0 %v244, 111
    %v252 = vpop.permute.xlu0 %251
    %253 = vrot.lane.b32.xlu0 %v245, 111
    %v254 = vpop.permute.xlu0 %253
    %vm255 = vcmask 908288
    %v256 = vsel %vm255, %v250, %v252
    %v257 = vsel %vm255, %v252, %v254
    %v260 = vsel %vm82, %v256, 0.0
    %v261 = vsel %vm83, %v257, 0.0
    %262 = vst [vmem:[#allocation3 + $0x80] sm:$0xff] %v260
    %263 = vst [vmem:[#allocation3 + $0x88] sm:$0xff] %v261
    %v264 = vld [vmem:[%s1] sm:$0xff]
    %v265 = vld [vmem:[#allocation3] sm:$0xff]
    %v266 = vld [vmem:[#allocation3 + $0x8] sm:$0xff]
    %v267 = vld [vmem:[#allocation3 + $0x10] sm:$0xff]
    %v268 = vld [vmem:[#allocation3 + $0x18] sm:$0xff]
    %v269 = vld [vmem:[#allocation3 + $0x20] sm:$0xff]
    %v270 = vld [vmem:[#allocation3 + $0x28] sm:$0xff]
    %v271 = vld [vmem:[#allocation3 + $0x30] sm:$0xff]
    %v272 = vld [vmem:[#allocation3 + $0x38] sm:$0xff]
    %v273 = vld [vmem:[#allocation3 + $0x40] sm:$0xff]
    %v274 = vld [vmem:[#allocation3 + $0x48] sm:$0xff]
    %v275 = vld [vmem:[#allocation3 + $0x50] sm:$0xff]
    %v276 = vld [vmem:[#allocation3 + $0x58] sm:$0xff]
    %v277 = vld [vmem:[#allocation3 + $0x60] sm:$0xff]
    %v278 = vld [vmem:[#allocation3 + $0x68] sm:$0xff]
    %v279 = vld [vmem:[#allocation3 + $0x70] sm:$0xff]
    %v280 = vld [vmem:[#allocation3 + $0x78] sm:$0xff]
    %v281 = vld [vmem:[#allocation3 + $0x80] sm:$0xff]
    %v282 = vld [vmem:[#allocation3 + $0x88] sm:$0xff]
    %v283 = vld [vmem:[%s2] sm:$0xff]
    %285 = vset.pattern.permute.xlu0 0
    %286 = vperm.xlu0 %285, %v283
    %v287 = vpop.permute.xlu0 %286
    %vm289 = vcmask 588800
    %v291 = vsel %vm289, %v264, 0
    %293 = vmatpush.msra.mxu0 0.0
    %294 = vmatpush.msra.mxu0 0.0
    %295 = vmatpush.msra.mxu0 0.0
    %296 = vmatpush.msra.mxu0 0.0
    %297 = vmatpush.msra.mxu0 0.0
    %298 = vmatpush.msra.mxu0 0.0
    %299 = vmatpush.msra.mxu0 0.0
    %300 = vmatpush.msra.mxu0 %v281
    %301 = vmatpush.msra.mxu0 %v279
    %302 = vmatpush.msra.mxu0 %v277
    %303 = vmatpush.msra.mxu0 %v275
    %304 = vmatpush.msra.mxu0 %v273
    %305 = vmatpush.msra.mxu0 %v271
    %306 = vmatpush.msra.mxu0 %v269
    %307 = vmatpush.msra.mxu0 %v267
    %308 = vmatpush.msra.mxu0 %v265
    %309 = vmatmul.f32.gmra.mxu0 %v291
    %v310 = vpop.f32.mrf.mxu0
    %v311 = vadd.f32 %v287, %v310
    %312 = vdwg.mxu0
    %313 = vmatpush.msra.mxu0 0.0
    %314 = vmatpush.msra.mxu0 0.0
    %315 = vmatpush.msra.mxu0 0.0
    %316 = vmatpush.msra.mxu0 0.0
    %317 = vmatpush.msra.mxu0 0.0
    %318 = vmatpush.msra.mxu0 0.0
    %319 = vmatpush.msra.mxu0 0.0
    %320 = vmatpush.msra.mxu0 %v282
    %321 = vmatpush.msra.mxu0 %v280
    %322 = vmatpush.msra.mxu0 %v278
    %323 = vmatpush.msra.mxu0 %v276
    %324 = vmatpush.msra.mxu0 %v274
    %325 = vmatpush.msra.mxu0 %v272
    %326 = vmatpush.msra.mxu0 %v270
    %327 = vmatpush.msra.mxu0 %v268
    %328 = vmatpush.msra.mxu0 %v266
    %329 = vmatmul.f32.gmra.mxu0 %v291
    %v330 = vpop.f32.mrf.mxu0
    %v331 = vadd.f32 %v287, %v330
    %332 = vdwg.mxu0
    %vm333 = vcmp.gt.f32.partialorder %v311, 0.0
    %vm334 = vcmp.gt.f32.partialorder %v331, 0.0
    %v335 = vmul.f32 %v311, 0.1
    %v336 = vmul.f32 %v331, 0.1
    %v337 = vsel %vm333, %v311, %v335
    %v338 = vsel %vm334, %v331, %v336
    %339 = vst [vmem:[#allocation2 + $0x8] sm:$0xff] %v337
    %340 = vst [vmem:[#allocation2 + $0x10] sm:$0xff] %v338
    %v341 = vld [vmem:[#allocation2] sm:$0xff]
    %v342 = vld [vmem:[#allocation2 + $0x8] sm:$0xff]
    %v343 = vld [vmem:[#allocation2 + $0x10] sm:$0xff]
    %347 = vrot.lane.b32.xlu0 %v341, 34
    %v348 = vpop.permute.xlu0 %347
    %349 = vrot.lane.b32.xlu0 %v342, 34
    %v350 = vpop.permute.xlu0 %349
    %351 = vrot.lane.b32.xlu0 %v343, 34
    %v352 = vpop.permute.xlu0 %351
    %vm353 = vcmask 277504
    %v354 = vsel %vm353, %v348, %v350
    %v355 = vsel %vm353, %v350, %v352
    %v358 = vsel %vm66, %v354, 0.0
    %v359 = vsel %vm67, %v355, 0.0
    %360 = vst [vmem:[#allocation3] sm:$0xff] %v358
    %361 = vst [vmem:[#allocation3 + $0x8] sm:$0xff] %v359
    %v362 = vld [vmem:[#allocation2] sm:$0xff]
    %v363 = vld [vmem:[#allocation2 + $0x8] sm:$0xff]
    %v364 = vld [vmem:[#allocation2 + $0x10] sm:$0xff]
    %368 = vrot.lane.b32.xlu0 %v362, 32
    %v369 = vpop.permute.xlu0 %368
    %370 = vrot.lane.b32.xlu0 %v363, 32
    %v371 = vpop.permute.xlu0 %370
    %372 = vrot.lane.b32.xlu0 %v364, 32
    %v373 = vpop.permute.xlu0 %372
    %vm374 = vcmask 261120
    %v375 = vsel %vm374, %v369, %v371
    %v376 = vsel %vm374, %v371, %v373
    %379 = vst [vmem:[#allocation3 + $0x10] sm:$0xff] %v375
    %380 = vst [vmem:[#allocation3 + $0x18] sm:$0xff] %v376
    %v381 = vld [vmem:[#allocation2] sm:$0xff]
    %v382 = vld [vmem:[#allocation2 + $0x8] sm:$0xff]
    %v383 = vld [vmem:[#allocation2 + $0x10] sm:$0xff]
    %387 = vrot.lane.b32.xlu0 %v381, 30
    %v388 = vpop.permute.xlu0 %387
    %389 = vrot.lane.b32.xlu0 %v382, 30
    %v390 = vpop.permute.xlu0 %389
    %391 = vrot.lane.b32.xlu0 %v383, 30
    %v392 = vpop.permute.xlu0 %391
    %vm393 = vcmask 244736
    %v394 = vsel %vm393, %v388, %v390
    %v395 = vsel %vm393, %v390, %v392
    %v398 = vsel %vm90, %v394, 0.0
    %v399 = vsel %vm91, %v395, 0.0
    %400 = vst [vmem:[#allocation3 + $0x20] sm:$0xff] %v398
    %401 = vst [vmem:[#allocation3 + $0x28] sm:$0xff] %v399
    %v402 = vld [vmem:[#allocation2] sm:$0xff]
    %v403 = vld [vmem:[#allocation2 + $0x8] sm:$0xff]
    %v404 = vld [vmem:[#allocation2 + $0x10] sm:$0xff]
    %408 = vrot.lane.b32.xlu0 %v402, 2
    %v409 = vpop.permute.xlu0 %408
    %410 = vrot.lane.b32.xlu0 %v403, 2
    %v411 = vpop.permute.xlu0 %410
    %412 = vrot.lane.b32.xlu0 %v404, 2
    %v413 = vpop.permute.xlu0 %412
    %vm414 = vcmask 15360
    %v415 = vsel %vm414, %v409, %v411
    %v416 = vsel %vm414, %v411, %v413
    %v419 = vsel %vm66, %v415, 0.0
    %v420 = vsel %vm67, %v416, 0.0
    %421 = vst [vmem:[#allocation3 + $0x30] sm:$0xff] %v419
    %422 = vst [vmem:[#allocation3 + $0x38] sm:$0xff] %v420
    %v423 = vld [vmem:[#allocation2 + $0x8] sm:$0xff]
    %v424 = vld [vmem:[#allocation2 + $0x10] sm:$0xff]
    %425 = vst [vmem:[#allocation3 + $0x40] sm:$0xff] %v423
    %426 = vst [vmem:[#allocation3 + $0x48] sm:$0xff] %v424
    %v427 = vld [vmem:[#allocation2 + $0x8] sm:$0xff]
    %v428 = vld [vmem:[#allocation2 + $0x10] sm:$0xff]
    %v429 = vld [vmem:[#allocation2 + $0x18] sm:$0xff]
    %433 = vrot.lane.b32.xlu0 %v427, 126
    %v434 = vpop.permute.xlu0 %433
    %435 = vrot.lane.b32.xlu0 %v428, 126
    %v436 = vpop.permute.xlu0 %435
    %437 = vrot.lane.b32.xlu0 %v429, 126
    %v438 = vpop.permute.xlu0 %437
    %vm439 = vcmask 1031168
    %v440 = vsel %vm439, %v434, %v436
    %v441 = vsel %vm439, %v436, %v438
    %v444 = vsel %vm90, %v440, 0.0
    %v445 = vsel %vm91, %v441, 0.0
    %446 = vst [vmem:[#allocation3 + $0x50] sm:$0xff] %v444
    %447 = vst [vmem:[#allocation3 + $0x58] sm:$0xff] %v445
    %v448 = vld [vmem:[#allocation2 + $0x8] sm:$0xff]
    %v449 = vld [vmem:[#allocation2 + $0x10] sm:$0xff]
    %v450 = vld [vmem:[#allocation2 + $0x18] sm:$0xff]
    %454 = vrot.lane.b32.xlu0 %v448, 98
    %v455 = vpop.permute.xlu0 %454
    %456 = vrot.lane.b32.xlu0 %v449, 98
    %v457 = vpop.permute.xlu0 %456
    %458 = vrot.lane.b32.xlu0 %v450, 98
    %v459 = vpop.permute.xlu0 %458
    %vm460 = vcmask 801792
    %v461 = vsel %vm460, %v455, %v457
    %v462 = vsel %vm460, %v457, %v459
    %v465 = vsel %vm66, %v461, 0.0
    %v466 = vsel %vm67, %v462, 0.0
    %467 = vst [vmem:[#allocation3 + $0x60] sm:$0xff] %v465
    %468 = vst [vmem:[#allocation3 + $0x68] sm:$0xff] %v466
    %v469 = vld [vmem:[#allocation2 + $0x8] sm:$0xff]
    %v470 = vld [vmem:[#allocation2 + $0x10] sm:$0xff]
    %v471 = vld [vmem:[#allocation2 + $0x18] sm:$0xff]
    %475 = vrot.lane.b32.xlu0 %v469, 96
    %v476 = vpop.permute.xlu0 %475
    %477 = vrot.lane.b32.xlu0 %v470, 96
    %v478 = vpop.permute.xlu0 %477
    %479 = vrot.lane.b32.xlu0 %v471, 96
    %v480 = vpop.permute.xlu0 %479
    %vm481 = vcmask 785408
    %v482 = vsel %vm481, %v476, %v478
    %v483 = vsel %vm481, %v478, %v480
    %486 = vst [vmem:[#allocation3 + $0x70] sm:$0xff] %v482
    %487 = vst [vmem:[#allocation3 + $0x78] sm:$0xff] %v483
    %v488 = vld [vmem:[#allocation2 + $0x8] sm:$0xff]
    %v489 = vld [vmem:[#allocation2 + $0x10] sm:$0xff]
    %v490 = vld [vmem:[#allocation2 + $0x18] sm:$0xff]
    %494 = vrot.lane.b32.xlu0 %v488, 94
    %v495 = vpop.permute.xlu0 %494
    %496 = vrot.lane.b32.xlu0 %v489, 94
    %v497 = vpop.permute.xlu0 %496
    %498 = vrot.lane.b32.xlu0 %v490, 94
    %v499 = vpop.permute.xlu0 %498
    %vm500 = vcmask 769024
    %v501 = vsel %vm500, %v495, %v497
    %v502 = vsel %vm500, %v497, %v499
    %v505 = vsel %vm90, %v501, 0.0
    %v506 = vsel %vm91, %v502, 0.0
    %507 = vst [vmem:[#allocation3 + $0x80] sm:$0xff] %v505
    %508 = vst [vmem:[#allocation3 + $0x88] sm:$0xff] %v506
    %s509 = scalar_lea.vmem %s1, 8
    %v510 = vld [vmem:[%s509] sm:$0xff]
    %v511 = vld [vmem:[#allocation3] sm:$0xff]
    %v512 = vld [vmem:[#allocation3 + $0x8] sm:$0xff]
    %v513 = vld [vmem:[#allocation3 + $0x10] sm:$0xff]
    %v514 = vld [vmem:[#allocation3 + $0x18] sm:$0xff]
    %v515 = vld [vmem:[#allocation3 + $0x20] sm:$0xff]
    %v516 = vld [vmem:[#allocation3 + $0x28] sm:$0xff]
    %v517 = vld [vmem:[#allocation3 + $0x30] sm:$0xff]
    %v518 = vld [vmem:[#allocation3 + $0x38] sm:$0xff]
    %v519 = vld [vmem:[#allocation3 + $0x40] sm:$0xff]
    %v520 = vld [vmem:[#allocation3 + $0x48] sm:$0xff]
    %v521 = vld [vmem:[#allocation3 + $0x50] sm:$0xff]
    %v522 = vld [vmem:[#allocation3 + $0x58] sm:$0xff]
    %v523 = vld [vmem:[#allocation3 + $0x60] sm:$0xff]
    %v524 = vld [vmem:[#allocation3 + $0x68] sm:$0xff]
    %v525 = vld [vmem:[#allocation3 + $0x70] sm:$0xff]
    %v526 = vld [vmem:[#allocation3 + $0x78] sm:$0xff]
    %v527 = vld [vmem:[#allocation3 + $0x80] sm:$0xff]
    %v528 = vld [vmem:[#allocation3 + $0x88] sm:$0xff]
    %s529 = scalar_lea.vmem %s2, 8
    %v530 = vld [vmem:[%s529] sm:$0xff]
    %532 = vset.pattern.permute.xlu0 0
    %533 = vperm.xlu0 %532, %v530
    %v534 = vpop.permute.xlu0 %533
    %v537 = vsel %vm289, %v510, 0
    %539 = vmatpush.msra.mxu0 0.0
    %540 = vmatpush.msra.mxu0 0.0
    %541 = vmatpush.msra.mxu0 0.0
    %542 = vmatpush.msra.mxu0 0.0
    %543 = vmatpush.msra.mxu0 0.0
    %544 = vmatpush.msra.mxu0 0.0
    %545 = vmatpush.msra.mxu0 0.0
    %546 = vmatpush.msra.mxu0 %v527
    %547 = vmatpush.msra.mxu0 %v525
    %548 = vmatpush.msra.mxu0 %v523
    %549 = vmatpush.msra.mxu0 %v521
    %550 = vmatpush.msra.mxu0 %v519
    %551 = vmatpush.msra.mxu0 %v517
    %552 = vmatpush.msra.mxu0 %v515
    %553 = vmatpush.msra.mxu0 %v513
    %554 = vmatpush.msra.mxu0 %v511
    %555 = vmatmul.f32.gmra.mxu0 %v537
    %v556 = vpop.f32.mrf.mxu0
    %v557 = vadd.f32 %v534, %v556
    %558 = vdwg.mxu0
    %559 = vmatpush.msra.mxu0 0.0
    %560 = vmatpush.msra.mxu0 0.0
    %561 = vmatpush.msra.mxu0 0.0
    %562 = vmatpush.msra.mxu0 0.0
    %563 = vmatpush.msra.mxu0 0.0
    %564 = vmatpush.msra.mxu0 0.0
    %565 = vmatpush.msra.mxu0 0.0
    %566 = vmatpush.msra.mxu0 %v528
    %567 = vmatpush.msra.mxu0 %v526
    %568 = vmatpush.msra.mxu0 %v524
    %569 = vmatpush.msra.mxu0 %v522
    %570 = vmatpush.msra.mxu0 %v520
    %571 = vmatpush.msra.mxu0 %v518
    %572 = vmatpush.msra.mxu0 %v516
    %573 = vmatpush.msra.mxu0 %v514
    %574 = vmatpush.msra.mxu0 %v512
    %575 = vmatmul.f32.gmra.mxu0 %v537
    %v576 = vpop.f32.mrf.mxu0
    %v577 = vadd.f32 %v534, %v576
    %578 = vdwg.mxu0
    %v579 = vadd.f32 %v92, %v557
    %v580 = vadd.f32 %v93, %v577
    %vm581 = vcmp.gt.f32.partialorder %v579, 0.0
    %vm582 = vcmp.gt.f32.partialorder %v580, 0.0
    %v583 = vmul.f32 %v579, 0.1
    %v584 = vmul.f32 %v580, 0.1
    %v585 = vsel %vm581, %v579, %v583
    %v586 = vsel %vm582, %v580, %v584
    %587 = vst [vmem:[#allocation2 + $0x8] sm:$0xff] %v585
    %588 = vst [vmem:[#allocation2 + $0x10] sm:$0xff] %v586
    %v589 = vld [vmem:[#allocation2] sm:$0xff]
    %v590 = vld [vmem:[#allocation2 + $0x8] sm:$0xff]
    %v591 = vld [vmem:[#allocation2 + $0x10] sm:$0xff]
    %595 = vrot.lane.b32.xlu0 %v589, 17
    %v596 = vpop.permute.xlu0 %595
    %597 = vrot.lane.b32.xlu0 %v590, 17
    %v598 = vpop.permute.xlu0 %597
    %599 = vrot.lane.b32.xlu0 %v591, 17
    %v600 = vpop.permute.xlu0 %599
    %v601 = vsel %vm108, %v596, %v598
    %v602 = vsel %vm108, %v598, %v600
    %v605 = vsel %vm74, %v601, 0.0
    %v606 = vsel %vm75, %v602, 0.0
    %607 = vst [vmem:[#allocation3] sm:$0xff] %v605
    %608 = vst [vmem:[#allocation3 + $0x8] sm:$0xff] %v606
    %v609 = vld [vmem:[#allocation2] sm:$0xff]
    %v610 = vld [vmem:[#allocation2 + $0x8] sm:$0xff]
    %v611 = vld [vmem:[#allocation2 + $0x10] sm:$0xff]
    %615 = vrot.lane.b32.xlu0 %v609, 16
    %v616 = vpop.permute.xlu0 %615
    %617 = vrot.lane.b32.xlu0 %v610, 16
    %v618 = vpop.permute.xlu0 %617
    %619 = vrot.lane.b32.xlu0 %v611, 16
    %v620 = vpop.permute.xlu0 %619
    %v621 = vsel %vm129, %v616, %v618
    %v622 = vsel %vm129, %v618, %v620
    %625 = vst [vmem:[#allocation3 + $0x10] sm:$0xff] %v621
    %626 = vst [vmem:[#allocation3 + $0x18] sm:$0xff] %v622
    %v627 = vld [vmem:[#allocation2] sm:$0xff]
    %v628 = vld [vmem:[#allocation2 + $0x8] sm:$0xff]
    %v629 = vld [vmem:[#allocation2 + $0x10] sm:$0xff]
    %633 = vrot.lane.b32.xlu0 %v627, 15
    %v634 = vpop.permute.xlu0 %633
    %635 = vrot.lane.b32.xlu0 %v628, 15
    %v636 = vpop.permute.xlu0 %635
    %637 = vrot.lane.b32.xlu0 %v629, 15
    %v638 = vpop.permute.xlu0 %637
    %v639 = vsel %vm148, %v634, %v636
    %v640 = vsel %vm148, %v636, %v638
    %v643 = vsel %vm82, %v639, 0.0
    %v644 = vsel %vm83, %v640, 0.0
    %645 = vst [vmem:[#allocation3 + $0x20] sm:$0xff] %v643
    %646 = vst [vmem:[#allocation3 + $0x28] sm:$0xff] %v644
    %v647 = vld [vmem:[#allocation2] sm:$0xff]
    %v648 = vld [vmem:[#allocation2 + $0x8] sm:$0xff]
    %v649 = vld [vmem:[#allocation2 + $0x10] sm:$0xff]
    %653 = vrot.lane.b32.xlu0 %v647, 1
    %v654 = vpop.permute.xlu0 %653
    %655 = vrot.lane.b32.xlu0 %v648, 1
    %v656 = vpop.permute.xlu0 %655
    %657 = vrot.lane.b32.xlu0 %v649, 1
    %v658 = vpop.permute.xlu0 %657
    %v659 = vsel %vm169, %v654, %v656
    %v660 = vsel %vm169, %v656, %v658
    %v663 = vsel %vm74, %v659, 0.0
    %v664 = vsel %vm75, %v660, 0.0
    %665 = vst [vmem:[#allocation3 + $0x30] sm:$0xff] %v663
    %666 = vst [vmem:[#allocation3 + $0x38] sm:$0xff] %v664
    %v667 = vld [vmem:[#allocation2 + $0x8] sm:$0xff]
    %v668 = vld [vmem:[#allocation2 + $0x10] sm:$0xff]
    %669 = vst [vmem:[#allocation3 + $0x40] sm:$0xff] %v667
    %670 = vst [vmem:[#allocation3 + $0x48] sm:$0xff] %v668
    %v671 = vld [vmem:[#allocation2 + $0x8] sm:$0xff]
    %v672 = vld [vmem:[#allocation2 + $0x10] sm:$0xff]
    %v673 = vld [vmem:[#allocation2 + $0x18] sm:$0xff]
    %677 = vrot.lane.b32.xlu0 %v671, 127
    %v678 = vpop.permute.xlu0 %677
    %679 = vrot.lane.b32.xlu0 %v672, 127
    %v680 = vpop.permute.xlu0 %679
    %681 = vrot.lane.b32.xlu0 %v673, 127
    %v682 = vpop.permute.xlu0 %681
    %v683 = vsel %vm194, %v678, %v680
    %v684 = vsel %vm194, %v680, %v682
    %v687 = vsel %vm82, %v683, 0.0
    %v688 = vsel %vm83, %v684, 0.0
    %689 = vst [vmem:[#allocation3 + $0x50] sm:$0xff] %v687
    %690 = vst [vmem:[#allocation3 + $0x58] sm:$0xff] %v688
    %v691 = vld [vmem:[#allocation2 + $0x8] sm:$0xff]
    %v692 = vld [vmem:[#allocation2 + $0x10] sm:$0xff]
    %v693 = vld [vmem:[#allocation2 + $0x18] sm:$0xff]
    %697 = vrot.lane.b32.xlu0 %v691, 113
    %v698 = vpop.permute.xlu0 %697
    %699 = vrot.lane.b32.xlu0 %v692, 113
    %v700 = vpop.permute.xlu0 %699
    %701 = vrot.lane.b32.xlu0 %v693, 113
    %v702 = vpop.permute.xlu0 %701
    %v703 = vsel %vm215, %v698, %v700
    %v704 = vsel %vm215, %v700, %v702
    %v707 = vsel %vm74, %v703, 0.0
    %v708 = vsel %vm75, %v704, 0.0
    %709 = vst [vmem:[#allocation3 + $0x60] sm:$0xff] %v707
    %710 = vst [vmem:[#allocation3 + $0x68] sm:$0xff] %v708
    %v711 = vld [vmem:[#allocation2 + $0x8] sm:$0xff]
    %v712 = vld [vmem:[#allocation2 + $0x10] sm:$0xff]
    %v713 = vld [vmem:[#allocation2 + $0x18] sm:$0xff]
    %717 = vrot.lane.b32.xlu0 %v711, 112
    %v718 = vpop.permute.xlu0 %717
    %719 = vrot.lane.b32.xlu0 %v712, 112
    %v720 = vpop.permute.xlu0 %719
    %721 = vrot.lane.b32.xlu0 %v713, 112
    %v722 = vpop.permute.xlu0 %721
    %v723 = vsel %vm236, %v718, %v720
    %v724 = vsel %vm236, %v720, %v722
    %727 = vst [vmem:[#allocation3 + $0x70] sm:$0xff] %v723
    %728 = vst [vmem:[#allocation3 + $0x78] sm:$0xff] %v724
    %v729 = vld [vmem:[#allocation2 + $0x8] sm:$0xff]
    %v730 = vld [vmem:[#allocation2 + $0x10] sm:$0xff]
    %v731 = vld [vmem:[#allocation2 + $0x18] sm:$0xff]
    %735 = vrot.lane.b32.xlu0 %v729, 111
    %v736 = vpop.permute.xlu0 %735
    %737 = vrot.lane.b32.xlu0 %v730, 111
    %v738 = vpop.permute.xlu0 %737
    %739 = vrot.lane.b32.xlu0 %v731, 111
    %v740 = vpop.permute.xlu0 %739
    %v741 = vsel %vm255, %v736, %v738
    %v742 = vsel %vm255, %v738, %v740
    %v745 = vsel %vm82, %v741, 0.0
    %v746 = vsel %vm83, %v742, 0.0
    %747 = vst [vmem:[#allocation3 + $0x80] sm:$0xff] %v745
    %748 = vst [vmem:[#allocation3 + $0x88] sm:$0xff] %v746
    %s749 = scalar_lea.vmem %s1, 16
    %v750 = vld [vmem:[%s749] sm:$0xff]
    %v751 = vld [vmem:[#allocation3] sm:$0xff]
    %v752 = vld [vmem:[#allocation3 + $0x8] sm:$0xff]
    %v753 = vld [vmem:[#allocation3 + $0x10] sm:$0xff]
    %v754 = vld [vmem:[#allocation3 + $0x18] sm:$0xff]
    %v755 = vld [vmem:[#allocation3 + $0x20] sm:$0xff]
    %v756 = vld [vmem:[#allocation3 + $0x28] sm:$0xff]
    %v757 = vld [vmem:[#allocation3 + $0x30] sm:$0xff]
    %v758 = vld [vmem:[#allocation3 + $0x38] sm:$0xff]
    %v759 = vld [vmem:[#allocation3 + $0x40] sm:$0xff]
    %v760 = vld [vmem:[#allocation3 + $0x48] sm:$0xff]
    %v761 = vld [vmem:[#allocation3 + $0x50] sm:$0xff]
    %v762 = vld [vmem:[#allocation3 + $0x58] sm:$0xff]
    %v763 = vld [vmem:[#allocation3 + $0x60] sm:$0xff]
    %v764 = vld [vmem:[#allocation3 + $0x68] sm:$0xff]
    %v765 = vld [vmem:[#allocation3 + $0x70] sm:$0xff]
    %v766 = vld [vmem:[#allocation3 + $0x78] sm:$0xff]
    %v767 = vld [vmem:[#allocation3 + $0x80] sm:$0xff]
    %v768 = vld [vmem:[#allocation3 + $0x88] sm:$0xff]
    %s769 = scalar_lea.vmem %s2, 16
    %v770 = vld [vmem:[%s769] sm:$0xff]
    %772 = vset.pattern.permute.xlu0 0
    %773 = vperm.xlu0 %772, %v770
    %v774 = vpop.permute.xlu0 %773
    %v777 = vsel %vm289, %v750, 0
    %779 = vmatpush.msra.mxu0 0.0
    %780 = vmatpush.msra.mxu0 0.0
    %781 = vmatpush.msra.mxu0 0.0
    %782 = vmatpush.msra.mxu0 0.0
    %783 = vmatpush.msra.mxu0 0.0
    %784 = vmatpush.msra.mxu0 0.0
    %785 = vmatpush.msra.mxu0 0.0
    %786 = vmatpush.msra.mxu0 %v767
    %787 = vmatpush.msra.mxu0 %v765
    %788 = vmatpush.msra.mxu0 %v763
    %789 = vmatpush.msra.mxu0 %v761
    %790 = vmatpush.msra.mxu0 %v759
    %791 = vmatpush.msra.mxu0 %v757
    %792 = vmatpush.msra.mxu0 %v755
    %793 = vmatpush.msra.mxu0 %v753
    %794 = vmatpush.msra.mxu0 %v751
    %795 = vmatmul.f32.gmra.mxu0 %v777
    %v796 = vpop.f32.mrf.mxu0
    %v797 = vadd.f32 %v774, %v796
    %798 = vdwg.mxu0
    %799 = vmatpush.msra.mxu0 0.0
    %800 = vmatpush.msra.mxu0 0.0
    %801 = vmatpush.msra.mxu0 0.0
    %802 = vmatpush.msra.mxu0 0.0
    %803 = vmatpush.msra.mxu0 0.0
    %804 = vmatpush.msra.mxu0 0.0
    %805 = vmatpush.msra.mxu0 0.0
    %806 = vmatpush.msra.mxu0 %v768
    %807 = vmatpush.msra.mxu0 %v766
    %808 = vmatpush.msra.mxu0 %v764
    %809 = vmatpush.msra.mxu0 %v762
    %810 = vmatpush.msra.mxu0 %v760
    %811 = vmatpush.msra.mxu0 %v758
    %812 = vmatpush.msra.mxu0 %v756
    %813 = vmatpush.msra.mxu0 %v754
    %814 = vmatpush.msra.mxu0 %v752
    %815 = vmatmul.f32.gmra.mxu0 %v777
    %v816 = vpop.f32.mrf.mxu0
    %v817 = vadd.f32 %v774, %v816
    %818 = vdwg.mxu0
    %vm819 = vcmp.gt.f32.partialorder %v797, 0.0
    %vm820 = vcmp.gt.f32.partialorder %v817, 0.0
    %v821 = vmul.f32 %v797, 0.1
    %v822 = vmul.f32 %v817, 0.1
    %v823 = vsel %vm819, %v797, %v821
    %v824 = vsel %vm820, %v817, %v822
    %825 = vst [vmem:[#allocation2 + $0x8] sm:$0xff] %v823
    %826 = vst [vmem:[#allocation2 + $0x10] sm:$0xff] %v824
    %v827 = vld [vmem:[#allocation2] sm:$0xff]
    %v828 = vld [vmem:[#allocation2 + $0x8] sm:$0xff]
    %v829 = vld [vmem:[#allocation2 + $0x10] sm:$0xff]
    %833 = vrot.lane.b32.xlu0 %v827, 34
    %v834 = vpop.permute.xlu0 %833
    %835 = vrot.lane.b32.xlu0 %v828, 34
    %v836 = vpop.permute.xlu0 %835
    %837 = vrot.lane.b32.xlu0 %v829, 34
    %v838 = vpop.permute.xlu0 %837
    %v839 = vsel %vm353, %v834, %v836
    %v840 = vsel %vm353, %v836, %v838
    %v843 = vsel %vm66, %v839, 0.0
    %v844 = vsel %vm67, %v840, 0.0
    %845 = vst [vmem:[#allocation3] sm:$0xff] %v843
    %846 = vst [vmem:[#allocation3 + $0x8] sm:$0xff] %v844
    %v847 = vld [vmem:[#allocation2] sm:$0xff]
    %v848 = vld [vmem:[#allocation2 + $0x8] sm:$0xff]
    %v849 = vld [vmem:[#allocation2 + $0x10] sm:$0xff]
    %853 = vrot.lane.b32.xlu0 %v847, 32
    %v854 = vpop.permute.xlu0 %853
    %855 = vrot.lane.b32.xlu0 %v848, 32
    %v856 = vpop.permute.xlu0 %855
    %857 = vrot.lane.b32.xlu0 %v849, 32
    %v858 = vpop.permute.xlu0 %857
    %v859 = vsel %vm374, %v854, %v856
    %v860 = vsel %vm374, %v856, %v858
    %863 = vst [vmem:[#allocation3 + $0x10] sm:$0xff] %v859
    %864 = vst [vmem:[#allocation3 + $0x18] sm:$0xff] %v860
    %v865 = vld [vmem:[#allocation2] sm:$0xff]
    %v866 = vld [vmem:[#allocation2 + $0x8] sm:$0xff]
    %v867 = vld [vmem:[#allocation2 + $0x10] sm:$0xff]
    %871 = vrot.lane.b32.xlu0 %v865, 30
    %v872 = vpop.permute.xlu0 %871
    %873 = vrot.lane.b32.xlu0 %v866, 30
    %v874 = vpop.permute.xlu0 %873
    %875 = vrot.lane.b32.xlu0 %v867, 30
    %v876 = vpop.permute.xlu0 %875
    %v877 = vsel %vm393, %v872, %v874
    %v878 = vsel %vm393, %v874, %v876
    %v881 = vsel %vm90, %v877, 0.0
    %v882 = vsel %vm91, %v878, 0.0
    %883 = vst [vmem:[#allocation3 + $0x20] sm:$0xff] %v881
    %884 = vst [vmem:[#allocation3 + $0x28] sm:$0xff] %v882
    %v885 = vld [vmem:[#allocation2] sm:$0xff]
    %v886 = vld [vmem:[#allocation2 + $0x8] sm:$0xff]
    %v887 = vld [vmem:[#allocation2 + $0x10] sm:$0xff]
    %891 = vrot.lane.b32.xlu0 %v885, 2
    %v892 = vpop.permute.xlu0 %891
    %893 = vrot.lane.b32.xlu0 %v886, 2
    %v894 = vpop.permute.xlu0 %893
    %895 = vrot.lane.b32.xlu0 %v887, 2
    %v896 = vpop.permute.xlu0 %895
    %v897 = vsel %vm414, %v892, %v894
    %v898 = vsel %vm414, %v894, %v896
    %v901 = vsel %vm66, %v897, 0.0
    %v902 = vsel %vm67, %v898, 0.0
    %903 = vst [vmem:[#allocation3 + $0x30] sm:$0xff] %v901
    %904 = vst [vmem:[#allocation3 + $0x38] sm:$0xff] %v902
    %v905 = vld [vmem:[#allocation2 + $0x8] sm:$0xff]
    %v906 = vld [vmem:[#allocation2 + $0x10] sm:$0xff]
    %907 = vst [vmem:[#allocation3 + $0x40] sm:$0xff] %v905
    %908 = vst [vmem:[#allocation3 + $0x48] sm:$0xff] %v906
    %v909 = vld [vmem:[#allocation2 + $0x8] sm:$0xff]
    %v910 = vld [vmem:[#allocation2 + $0x10] sm:$0xff]
    %v911 = vld [vmem:[#allocation2 + $0x18] sm:$0xff]
    %915 = vrot.lane.b32.xlu0 %v909, 126
    %v916 = vpop.permute.xlu0 %915
    %917 = vrot.lane.b32.xlu0 %v910, 126
    %v918 = vpop.permute.xlu0 %917
    %919 = vrot.lane.b32.xlu0 %v911, 126
    %v920 = vpop.permute.xlu0 %919
    %v921 = vsel %vm439, %v916, %v918
    %v922 = vsel %vm439, %v918, %v920
    %v925 = vsel %vm90, %v921, 0.0
    %v926 = vsel %vm91, %v922, 0.0
    %927 = vst [vmem:[#allocation3 + $0x50] sm:$0xff] %v925
    %928 = vst [vmem:[#allocation3 + $0x58] sm:$0xff] %v926
    %v929 = vld [vmem:[#allocation2 + $0x8] sm:$0xff]
    %v930 = vld [vmem:[#allocation2 + $0x10] sm:$0xff]
    %v931 = vld [vmem:[#allocation2 + $0x18] sm:$0xff]
    %935 = vrot.lane.b32.xlu0 %v929, 98
    %v936 = vpop.permute.xlu0 %935
    %937 = vrot.lane.b32.xlu0 %v930, 98
    %v938 = vpop.permute.xlu0 %937
    %939 = vrot.lane.b32.xlu0 %v931, 98
    %v940 = vpop.permute.xlu0 %939
    %v941 = vsel %vm460, %v936, %v938
    %v942 = vsel %vm460, %v938, %v940
    %v945 = vsel %vm66, %v941, 0.0
    %v946 = vsel %vm67, %v942, 0.0
    %947 = vst [vmem:[#allocation3 + $0x60] sm:$0xff] %v945
    %948 = vst [vmem:[#allocation3 + $0x68] sm:$0xff] %v946
    %v949 = vld [vmem:[#allocation2 + $0x8] sm:$0xff]
    %v950 = vld [vmem:[#allocation2 + $0x10] sm:$0xff]
    %v951 = vld [vmem:[#allocation2 + $0x18] sm:$0xff]
    %955 = vrot.lane.b32.xlu0 %v949, 96
    %v956 = vpop.permute.xlu0 %955
    %957 = vrot.lane.b32.xlu0 %v950, 96
    %v958 = vpop.permute.xlu0 %957
    %959 = vrot.lane.b32.xlu0 %v951, 96
    %v960 = vpop.permute.xlu0 %959
    %v961 = vsel %vm481, %v956, %v958
    %v962 = vsel %vm481, %v958, %v960
    %965 = vst [vmem:[#allocation3 + $0x70] sm:$0xff] %v961
    %966 = vst [vmem:[#allocation3 + $0x78] sm:$0xff] %v962
    %v967 = vld [vmem:[#allocation2 + $0x8] sm:$0xff]
    %v968 = vld [vmem:[#allocation2 + $0x10] sm:$0xff]
    %v969 = vld [vmem:[#allocation2 + $0x18] sm:$0xff]
    %973 = vrot.lane.b32.xlu0 %v967, 94
    %v974 = vpop.permute.xlu0 %973
    %975 = vrot.lane.b32.xlu0 %v968, 94
    %v976 = vpop.permute.xlu0 %975
    %977 = vrot.lane.b32.xlu0 %v969, 94
    %v978 = vpop.permute.xlu0 %977
    %v979 = vsel %vm500, %v974, %v976
    %v980 = vsel %vm500, %v976, %v978
    %v983 = vsel %vm90, %v979, 0.0
    %v984 = vsel %vm91, %v980, 0.0
    %985 = vst [vmem:[#allocation3 + $0x80] sm:$0xff] %v983
    %986 = vst [vmem:[#allocation3 + $0x88] sm:$0xff] %v984
    %s987 = scalar_lea.vmem %s1, 24
    %v988 = vld [vmem:[%s987] sm:$0xff]
    %v989 = vld [vmem:[#allocation3] sm:$0xff]
    %v990 = vld [vmem:[#allocation3 + $0x8] sm:$0xff]
    %v991 = vld [vmem:[#allocation3 + $0x10] sm:$0xff]
    %v992 = vld [vmem:[#allocation3 + $0x18] sm:$0xff]
    %v993 = vld [vmem:[#allocation3 + $0x20] sm:$0xff]
    %v994 = vld [vmem:[#allocation3 + $0x28] sm:$0xff]
    %v995 = vld [vmem:[#allocation3 + $0x30] sm:$0xff]
    %v996 = vld [vmem:[#allocation3 + $0x38] sm:$0xff]
    %v997 = vld [vmem:[#allocation3 + $0x40] sm:$0xff]
    %v998 = vld [vmem:[#allocation3 + $0x48] sm:$0xff]
    %v999 = vld [vmem:[#allocation3 + $0x50] sm:$0xff]
    %v1000 = vld [vmem:[#allocation3 + $0x58] sm:$0xff]
    %v1001 = vld [vmem:[#allocation3 + $0x60] sm:$0xff]
    %v1002 = vld [vmem:[#allocation3 + $0x68] sm:$0xff]
    %v1003 = vld [vmem:[#allocation3 + $0x70] sm:$0xff]
    %v1004 = vld [vmem:[#allocation3 + $0x78] sm:$0xff]
    %v1005 = vld [vmem:[#allocation3 + $0x80] sm:$0xff]
    %v1006 = vld [vmem:[#allocation3 + $0x88] sm:$0xff]
    %s1007 = scalar_lea.vmem %s2, 24
    %v1008 = vld [vmem:[%s1007] sm:$0xff]
    %1010 = vset.pattern.permute.xlu0 0
    %1011 = vperm.xlu0 %1010, %v1008
    %v1012 = vpop.permute.xlu0 %1011
    %v1015 = vsel %vm289, %v988, 0
    %1017 = vmatpush.msra.mxu0 0.0
    %1018 = vmatpush.msra.mxu0 0.0
    %1019 = vmatpush.msra.mxu0 0.0
    %1020 = vmatpush.msra.mxu0 0.0
    %1021 = vmatpush.msra.mxu0 0.0
    %1022 = vmatpush.msra.mxu0 0.0
    %1023 = vmatpush.msra.mxu0 0.0
    %1024 = vmatpush.msra.mxu0 %v1005
    %1025 = vmatpush.msra.mxu0 %v1003
    %1026 = vmatpush.msra.mxu0 %v1001
    %1027 = vmatpush.msra.mxu0 %v999
    %1028 = vmatpush.msra.mxu0 %v997
    %1029 = vmatpush.msra.mxu0 %v995
    %1030 = vmatpush.msra.mxu0 %v993
    %1031 = vmatpush.msra.mxu0 %v991
    %1032 = vmatpush.msra.mxu0 %v989
    %1033 = vmatmul.f32.gmra.mxu0 %v1015
    %v1034 = vpop.f32.mrf.mxu0
    %v1035 = vadd.f32 %v1012, %v1034
    %1036 = vdwg.mxu0
    %1037 = vmatpush.msra.mxu0 0.0
    %1038 = vmatpush.msra.mxu0 0.0
    %1039 = vmatpush.msra.mxu0 0.0
    %1040 = vmatpush.msra.mxu0 0.0
    %1041 = vmatpush.msra.mxu0 0.0
    %1042 = vmatpush.msra.mxu0 0.0
    %1043 = vmatpush.msra.mxu0 0.0
    %1044 = vmatpush.msra.mxu0 %v1006
    %1045 = vmatpush.msra.mxu0 %v1004
    %1046 = vmatpush.msra.mxu0 %v1002
    %1047 = vmatpush.msra.mxu0 %v1000
    %1048 = vmatpush.msra.mxu0 %v998
    %1049 = vmatpush.msra.mxu0 %v996
    %1050 = vmatpush.msra.mxu0 %v994
    %1051 = vmatpush.msra.mxu0 %v992
    %1052 = vmatpush.msra.mxu0 %v990
    %1053 = vmatmul.f32.gmra.mxu0 %v1015
    %v1054 = vpop.f32.mrf.mxu0
    %v1055 = vadd.f32 %v1012, %v1054
    %1056 = vdwg.mxu0
    %v1057 = vadd.f32 %v585, %v1035
    %v1058 = vadd.f32 %v586, %v1055
    %vm1059 = vcmp.gt.f32.partialorder %v1057, 0.0
    %vm1060 = vcmp.gt.f32.partialorder %v1058, 0.0
    %v1061 = vmul.f32 %v1057, 0.1
    %v1062 = vmul.f32 %v1058, 0.1
    %v1063 = vsel %vm1059, %v1057, %v1061
    %v1064 = vsel %vm1060, %v1058, %v1062
    %v1065 = vadd.f32 %v1063, %v92
    %v1066 = vadd.f32 %v1064, %v93
    %1067 = vst [vmem:[#allocation7] sm:$0xff] %v1065
    %1068 = vst [vmem:[#allocation7 + $0x8] sm:$0xff] %v1066
    // Predicated region
    $region18: #{tpu_custom_call.1} parent=1 // pred_check
      _
    $region19: #{tpu_custom_call.1} parent=1 // pred_check_branch
      %1070 = sbr.rel (0) target = $region21
    $region20: #{tpu_custom_call.1} parent=1 // pred_region
      %1072 = vsyncadd [#allocation6], 0
      %s1074 = sshll.u32 [#allocation7], 4
      %s1075 = int_to_ptr.vmem [resolvable:$true] %s1074
      %s1076 = sshll.u32 %s3, 4
      %s1077 = int_to_ptr.hbm [resolvable:$true] %s1076
      %1079 = dma.vmem_to_hbm [thread:$0]  %s1075, 256, %s1077, [#allocation6]
    $region21: #{tpu_custom_call.1} parent=1 // pred_fallthru
      _
    // Predicated region
    $region22: #{tpu_custom_call.1} parent=1 // pred_check
      _
    $region23: #{tpu_custom_call.1} parent=1 // pred_check_branch
      %1081 = sbr.rel (0) target = $region25
    $region24: #{tpu_custom_call.1} parent=1 // pred_region
      %1083 = dma.done [#allocation6], 256
    $region25: #{tpu_custom_call.1} parent=1 // pred_fallthru
      _
    %1084 = vsyncpa [#allocation5], 1
    %1085 = vsyncpa [#allocation6], 1

</llo_original>
